<compile_context>
chip_gen: v7x
topology: tpu7x:2x2x1
jax: 0.10.0
libtpu: 0.0.40
codegen_flags: <defaults>
</compile_context>

<pallas_src>
import functools

import jax
import jax.numpy as jnp
import numpy as np
from jax import lax
from jax.experimental import pallas as pl
from jax.experimental.pallas import tpu as pltpu


def _residual_block_kernel(
    x_ref,
    w1_ref, b1_ref, g1_ref, be1_ref,
    w2_ref, b2_ref, g2_ref, be2_ref,
    out1_ref, out2_ref,
    xpad_ref, o1pad_ref,
    *, kernel_size, dilation, seq_len, eps, matmul_dtype,
):
    k = kernel_size
    d = dilation
    d2 = 2 * d
    L = seq_len
    pad1 = (k - 1) * d
    pad2 = (k - 1) * d2
    bt = x_ref.shape[0]
    c_in = x_ref.shape[-1]
    c_out = w1_ref.shape[-1]

    # Zero the causal left-pad regions of the scratch buffers (rows [0:pad)
    # stay zero for every batch processed in this grid step).
    if pad1 > 0:
        xpad_ref[:pad1, :] = jnp.zeros((pad1, c_in), matmul_dtype)
    if pad2 > 0:
        o1pad_ref[:pad2, :] = jnp.zeros((pad2, c_out), matmul_dtype)

    # Hoist parameter loads out of the batch loop (f32 for LN / bias math).
    b1 = b1_ref[...].astype(jnp.float32)
    g1 = g1_ref[...].astype(jnp.float32)
    be1 = be1_ref[...].astype(jnp.float32)
    b2 = b2_ref[...].astype(jnp.float32)
    g2 = g2_ref[...].astype(jnp.float32)
    be2 = be2_ref[...].astype(jnp.float32)

    for b in range(bt):  # small static batch tile -> fully unrolled
        xb = x_ref[b]    # (L, Cin), input dtype

        # ---- causal dilated conv #1: write x into padded scratch, k tap matmuls
        xpad_ref[pad1:, :] = xb.astype(matmul_dtype)
        acc1 = b1
        for j in range(k):
            acc1 = acc1 + jnp.dot(xpad_ref[j * d:j * d + L, :], w1_ref[j],
                                  preferred_element_type=jnp.float32)

        # ---- LayerNorm(C) + ReLU (stats in f32) ----
        m1 = jnp.mean(acc1, axis=-1, keepdims=True)
        v1 = jnp.mean(jnp.square(acc1 - m1), axis=-1, keepdims=True)
        out1 = jnp.maximum((acc1 - m1) * lax.rsqrt(v1 + eps) * g1 + be1, 0.0)
        out1_ref[b] = out1.astype(out1_ref.dtype)

        # ---- causal dilated conv #2 (dilation 2d) on out1, same scheme ----
        o1pad_ref[pad2:, :] = out1.astype(matmul_dtype)
        acc2 = b2
        for j in range(k):
            acc2 = acc2 + jnp.dot(o1pad_ref[j * d2:j * d2 + L, :], w2_ref[j],
                                  preferred_element_type=jnp.float32)

        m2 = jnp.mean(acc2, axis=-1, keepdims=True)
        v2 = jnp.mean(jnp.square(acc2 - m2), axis=-1, keepdims=True)
        out2 = jnp.maximum((acc2 - m2) * lax.rsqrt(v2 + eps) * g2 + be2, 0.0)

        # Residual uses the original (un-cast) activation.
        out2_ref[b] = (out2 + xb.astype(jnp.float32)).astype(out2_ref.dtype)


def _pick_block_b(B, L, c_in, c_out, pad1, pad2, x_itemsize, m_itemsize,
                  kernel_size, max_block_b, vmem_budget_bytes):
    """Largest divisor of B (<= max_block_b) whose VMEM footprint fits budget."""
    def est(bt):
        io = 2 * bt * L * c_in * x_itemsize            # x block (double-buffered)
        io += 2 * 2 * bt * L * c_out * x_itemsize      # out1 + out2 blocks
        scr = (L + pad1) * c_in * m_itemsize + (L + pad2) * c_out * m_itemsize
        wts = 2 * 2 * kernel_size * c_in * c_out * m_itemsize + 8 * c_out * 4
        return io + scr + wts

    best = 1
    for cand in range(1, min(B, max_block_b) + 1):
        if B % cand == 0 and est(cand) <= vmem_budget_bytes:
            best = cand
    return best


def residual_block(x, params, *, kernel_size=3, dilation=2, eps=1e-8,
                   matmul_dtype=None, max_block_b=8,
                   vmem_budget_bytes=16 * 1024 * 1024):
    """x: (B, L, C) channels-last. Returns (out1, out2 + x), matching the torch module."""
    w1, b1, g1, be1, w2, b2, g2, be2 = params
    B, L, c_in = x.shape
    c_out = w1.shape[-1]
    assert c_in == c_out, "residual add requires in_channel == out_channel"

    if matmul_dtype is None:
        # Set to jnp.bfloat16 on v6e/v7x for higher MXU throughput (accum stays f32).
        matmul_dtype = x.dtype

    pad1 = (kernel_size - 1) * dilation
    pad2 = (kernel_size - 1) * dilation * 2

    bt = _pick_block_b(B, L, c_in, c_out, pad1, pad2,
                       jnp.dtype(x.dtype).itemsize, jnp.dtype(matmul_dtype).itemsize,
                       kernel_size, max_block_b, vmem_budget_bytes)
    grid = (B // bt,)

    w1m = w1.astype(matmul_dtype)
    w2m = w2.astype(matmul_dtype)

    kernel = functools.partial(
        _residual_block_kernel,
        kernel_size=kernel_size, dilation=dilation, seq_len=L, eps=eps,
        matmul_dtype=matmul_dtype)

    grid_spec = pltpu.PrefetchScalarGridSpec(
        num_scalar_prefetch=0,
        grid=grid,
        in_specs=[
            pl.BlockSpec((bt, L, c_in), lambda i: (i, 0, 0)),
            pl.BlockSpec((kernel_size, c_in, c_out), lambda i: (0, 0, 0)),
            pl.BlockSpec((1, c_out), lambda i: (0, 0)),
            pl.BlockSpec((1, c_out), lambda i: (0, 0)),
            pl.BlockSpec((1, c_out), lambda i: (0, 0)),
            pl.BlockSpec((kernel_size, c_out, c_out), lambda i: (0, 0, 0)),
            pl.BlockSpec((1, c_out), lambda i: (0, 0)),
            pl.BlockSpec((1, c_out), lambda i: (0, 0)),
            pl.BlockSpec((1, c_out), lambda i: (0, 0)),
        ],
        out_specs=[
            pl.BlockSpec((bt, L, c_out), lambda i: (i, 0, 0)),
            pl.BlockSpec((bt, L, c_out), lambda i: (i, 0, 0)),
        ],
        scratch_shapes=[
            pltpu.VMEM((L + pad1, c_in), matmul_dtype),   # zero-padded x
            pltpu.VMEM((L + pad2, c_out), matmul_dtype),  # zero-padded out1
        ],
    )

    out_shapes = (jax.ShapeDtypeStruct((B, L, c_out), x.dtype),
                  jax.ShapeDtypeStruct((B, L, c_out), x.dtype))

    return pl.pallas_call(
        kernel,
        out_shape=out_shapes,
        grid_spec=grid_spec,
        compiler_params=pltpu.CompilerParams(
            dimension_semantics=("parallel",),
            vmem_limit_bytes=32 * 1024 * 1024),
    )(x, w1m, b1, g1, be1, w2m, b2, g2, be2)


def reference(x, params, *, kernel_size=3, dilation=2, eps=1e-8):
    """Plain-JAX reference of the same math (torch semantics)."""
    w1, b1, g1, be1, w2, b2, g2, be2 = params
    k = kernel_size

    def causal_conv(inp, w, b, dil):
        L = inp.shape[1]
        ip = jnp.pad(inp, ((0, 0), ((k - 1) * dil, 0), (0, 0)))
        out = jnp.broadcast_to(b.reshape(1, 1, -1),
                               (inp.shape[0], L, w.shape[-1])).astype(jnp.float32)
        for j in range(k):
            out = out + jnp.einsum('blc,co->blo', ip[:, j * dil:j * dil + L, :], w[j])
        return out

    def ln_relu(z, g, beta):
        m = z.mean(-1, keepdims=True)
        v = ((z - m) ** 2).mean(-1, keepdims=True)
        return jax.nn.relu((z - m) / jnp.sqrt(v + eps) * g.reshape(1, 1, -1)
                           + beta.reshape(1, 1, -1))

    out1 = ln_relu(causal_conv(x, w1, b1, dilation), g1, be1)
    out2 = ln_relu(causal_conv(out1, w2, b2, 2 * dilation), g2, be2)
    return out1, out2 + x


if __name__ == "__main__":
    B, L, C = 2, 16, 8          # in_channel == out_channel (required by residual add)
    K, DIL = 3, 2               # kernel_size, dilation_size

    key = jax.random.PRNGKey(0)
    k_x, k_w1, k_b1, k_w2, k_b2 = jax.random.split(key, 5)

    x = jax.random.normal(k_x, (B, L, C), dtype=jnp.float32)

    # Conv weights in (k, Cin, Cout) layout (== torch weight[o, c, 0, j] transposed).
    bound = 1.0 / np.sqrt(C * K)
    w1 = jax.random.uniform(k_w1, (K, C, C), jnp.float32, -bound, bound)
    b1 = jax.random.uniform(k_b1, (1, C), jnp.float32, -bound, bound)
    w2 = jax.random.uniform(k_w2, (K, C, C), jnp.float32, -bound, bound)
    b2 = jax.random.uniform(k_b2, (1, C), jnp.float32, -bound, bound)
    # LayerNorm affine params (torch default init), eps=1e-8 as in the module.
    g1 = jnp.ones((1, C), jnp.float32)
    be1 = jnp.zeros((1, C), jnp.float32)
    g2 = jnp.ones((1, C), jnp.float32)
    be2 = jnp.zeros((1, C), jnp.float32)

    params = (w1, b1, g1, be1, w2, b2, g2, be2)

    out1, out2 = residual_block(x, params, kernel_size=K, dilation=DIL, eps=1e-8)
    jax.block_until_ready((out1, out2))

    ref1, ref2 = reference(x, params, kernel_size=K, dilation=DIL, eps=1e-8)
    np.testing.assert_allclose(np.asarray(out1), np.asarray(ref1), rtol=1e-3, atol=1e-3)
    np.testing.assert_allclose(np.asarray(out2), np.asarray(ref2), rtol=1e-3, atol=1e-3)

    print("KERNEL_OK")
</pallas_src>

<mosaic_0001>
module attributes {stable_mosaic.version = 11 : i64} {
  func.func @_residual_block_kernel(%arg0: i32, %arg1: memref<2x16x8xf32, #tpu.memory_space<vmem>>, %arg2: memref<3x8x8xf32, #tpu.memory_space<vmem>>, %arg3: memref<1x8xf32, #tpu.memory_space<vmem>>, %arg4: memref<1x8xf32, #tpu.memory_space<vmem>>, %arg5: memref<1x8xf32, #tpu.memory_space<vmem>>, %arg6: memref<3x8x8xf32, #tpu.memory_space<vmem>>, %arg7: memref<1x8xf32, #tpu.memory_space<vmem>>, %arg8: memref<1x8xf32, #tpu.memory_space<vmem>>, %arg9: memref<1x8xf32, #tpu.memory_space<vmem>>, %arg10: memref<2x16x8xf32, #tpu.memory_space<vmem>>, %arg11: memref<2x16x8xf32, #tpu.memory_space<vmem>>, %arg12: memref<20x8xf32, #tpu.memory_space<vmem>>, %arg13: memref<24x8xf32, #tpu.memory_space<vmem>>) attributes {dimension_semantics = [#tpu.dimension_semantics<parallel>], iteration_bounds = array<i64: 1>, scalar_prefetch = 0 : i64, scratch_operands = 2 : i64, tpu.core_type = #tpu.core_type<tc>, window_params = [{transform_indices = @transform_0, window_bounds = array<i64: 2, 16, 8>}, {pipeline_mode = #tpu.pipeline_mode<synchronous>, transform_indices = @transform_1, window_bounds = array<i64: 3, 8, 8>}, {pipeline_mode = #tpu.pipeline_mode<synchronous>, transform_indices = @transform_2, window_bounds = array<i64: 1, 8>}, {pipeline_mode = #tpu.pipeline_mode<synchronous>, transform_indices = @transform_3, window_bounds = array<i64: 1, 8>}, {pipeline_mode = #tpu.pipeline_mode<synchronous>, transform_indices = @transform_4, window_bounds = array<i64: 1, 8>}, {pipeline_mode = #tpu.pipeline_mode<synchronous>, transform_indices = @transform_5, window_bounds = array<i64: 3, 8, 8>}, {pipeline_mode = #tpu.pipeline_mode<synchronous>, transform_indices = @transform_6, window_bounds = array<i64: 1, 8>}, {pipeline_mode = #tpu.pipeline_mode<synchronous>, transform_indices = @transform_7, window_bounds = array<i64: 1, 8>}, {pipeline_mode = #tpu.pipeline_mode<synchronous>, transform_indices = @transform_8, window_bounds = array<i64: 1, 8>}, {transform_indices = @transform_9, window_bounds = array<i64: 2, 16, 8>}, {transform_indices = @transform_10, window_bounds = array<i64: 2, 16, 8>}]} {
    %cst = arith.constant 0.000000e+00 : f32
    %0 = vector.broadcast %cst : f32 to vector<4x8xf32>
    %c0 = arith.constant 0 : index
    %c0_0 = arith.constant 0 : index
    %1 = vector.load %arg12[%c0, %c0_0] : memref<20x8xf32, #tpu.memory_space<vmem>>, vector<4x8xf32>
    tpu.vector_store %arg12[%c0, %c0_0], %0 {strides = array<i32>} : memref<20x8xf32, #tpu.memory_space<vmem>>, vector<4x8xf32>,
    %cst_1 = arith.constant 0.000000e+00 : f32
    %2 = vector.broadcast %cst_1 : f32 to vector<8x8xf32>
    %c0_2 = arith.constant 0 : index
    %c0_3 = arith.constant 0 : index
    %3 = vector.load %arg13[%c0_2, %c0_3] : memref<24x8xf32, #tpu.memory_space<vmem>>, vector<8x8xf32>
    tpu.vector_store %arg13[%c0_2, %c0_3], %2 {strides = array<i32>} : memref<24x8xf32, #tpu.memory_space<vmem>>, vector<8x8xf32>,
    %c0_4 = arith.constant 0 : index
    %c0_5 = arith.constant 0 : index
    %4 = vector.load %arg3[%c0_4, %c0_5] : memref<1x8xf32, #tpu.memory_space<vmem>>, vector<1x8xf32>
    %c0_6 = arith.constant 0 : index
    %c0_7 = arith.constant 0 : index
    %5 = vector.load %arg4[%c0_6, %c0_7] : memref<1x8xf32, #tpu.memory_space<vmem>>, vector<1x8xf32>
    %c0_8 = arith.constant 0 : index
    %c0_9 = arith.constant 0 : index
    %6 = vector.load %arg5[%c0_8, %c0_9] : memref<1x8xf32, #tpu.memory_space<vmem>>, vector<1x8xf32>
    %c0_10 = arith.constant 0 : index
    %c0_11 = arith.constant 0 : index
    %7 = vector.load %arg7[%c0_10, %c0_11] : memref<1x8xf32, #tpu.memory_space<vmem>>, vector<1x8xf32>
    %c0_12 = arith.constant 0 : index
    %c0_13 = arith.constant 0 : index
    %8 = vector.load %arg8[%c0_12, %c0_13] : memref<1x8xf32, #tpu.memory_space<vmem>>, vector<1x8xf32>
    %c0_14 = arith.constant 0 : index
    %c0_15 = arith.constant 0 : index
    %9 = vector.load %arg9[%c0_14, %c0_15] : memref<1x8xf32, #tpu.memory_space<vmem>>, vector<1x8xf32>
    %c0_16 = arith.constant 0 : index
    %c0_17 = arith.constant 0 : index
    %c0_18 = arith.constant 0 : index
    %10 = vector.load %arg1[%c0_16, %c0_17, %c0_18] : memref<2x16x8xf32, #tpu.memory_space<vmem>>, vector<1x16x8xf32>
    %11 = vector.shape_cast %10 : vector<1x16x8xf32> to vector<16x8xf32>
    %c4 = arith.constant 4 : index
    %c0_19 = arith.constant 0 : index
    %12 = vector.load %arg12[%c4, %c0_19] : memref<20x8xf32, #tpu.memory_space<vmem>>, vector<16x8xf32>
    tpu.vector_store %arg12[%c4, %c0_19], %11 {strides = array<i32>} : memref<20x8xf32, #tpu.memory_space<vmem>>, vector<16x8xf32>,
    %c0_20 = arith.constant 0 : index
    %c0_21 = arith.constant 0 : index
    %13 = vector.load %arg12[%c0_20, %c0_21] : memref<20x8xf32, #tpu.memory_space<vmem>>, vector<16x8xf32>
    %c0_22 = arith.constant 0 : index
    %c0_23 = arith.constant 0 : index
    %c0_24 = arith.constant 0 : index
    %14 = vector.load %arg2[%c0_22, %c0_23, %c0_24] : memref<3x8x8xf32, #tpu.memory_space<vmem>>, vector<1x8x8xf32>
    %15 = vector.shape_cast %14 : vector<1x8x8xf32> to vector<8x8xf32>
    %cst_25 = arith.constant dense<0.000000e+00> : vector<16x8xf32>
    %16 = tpu.matmul %13, %15, %cst_25 {dimension_numbers = #tpu.dot_dimension_numbers<[1], [0], [0], [1], [0, 0, 1, 1], [], []>} : vector<16x8xf32>, vector<8x8xf32>, vector<16x8xf32> -> vector<16x8xf32>
    %17 = vector.broadcast %4 : vector<1x8xf32> to vector<16x8xf32>
    %18 = arith.addf %17, %16 : vector<16x8xf32>
    %c2 = arith.constant 2 : index
    %c0_26 = arith.constant 0 : index
    %19 = vector.load %arg12[%c2, %c0_26] : memref<20x8xf32, #tpu.memory_space<vmem>>, vector<16x8xf32>
    %c1 = arith.constant 1 : index
    %c0_27 = arith.constant 0 : index
    %c0_28 = arith.constant 0 : index
    %20 = vector.load %arg2[%c1, %c0_27, %c0_28] : memref<3x8x8xf32, #tpu.memory_space<vmem>>, vector<1x8x8xf32>
    %21 = vector.shape_cast %20 : vector<1x8x8xf32> to vector<8x8xf32>
    %cst_29 = arith.constant dense<0.000000e+00> : vector<16x8xf32>
    %22 = tpu.matmul %19, %21, %cst_29 {dimension_numbers = #tpu.dot_dimension_numbers<[1], [0], [0], [1], [0, 0, 1, 1], [], []>} : vector<16x8xf32>, vector<8x8xf32>, vector<16x8xf32> -> vector<16x8xf32>
    %23 = arith.addf %18, %22 : vector<16x8xf32>
    %c4_30 = arith.constant 4 : index
    %c0_31 = arith.constant 0 : index
    %24 = vector.load %arg12[%c4_30, %c0_31] : memref<20x8xf32, #tpu.memory_space<vmem>>, vector<16x8xf32>
    %c2_32 = arith.constant 2 : index
    %c0_33 = arith.constant 0 : index
    %c0_34 = arith.constant 0 : index
    %25 = vector.load %arg2[%c2_32, %c0_33, %c0_34] : memref<3x8x8xf32, #tpu.memory_space<vmem>>, vector<1x8x8xf32>
    %26 = vector.shape_cast %25 : vector<1x8x8xf32> to vector<8x8xf32>
    %cst_35 = arith.constant dense<0.000000e+00> : vector<16x8xf32>
    %27 = tpu.matmul %24, %26, %cst_35 {dimension_numbers = #tpu.dot_dimension_numbers<[1], [0], [0], [1], [0, 0, 1, 1], [], []>} : vector<16x8xf32>, vector<8x8xf32>, vector<16x8xf32> -> vector<16x8xf32>
    %28 = arith.addf %23, %27 : vector<16x8xf32>
    %cst_36 = arith.constant dense<0.000000e+00> : vector<16xf32>
    %29 = vector.multi_reduction <add>, %28, %cst_36 [1] : vector<16x8xf32> to vector<16xf32>
    %30 = vector.shape_cast %29 : vector<16xf32> to vector<16x1xf32>
    %cst_37 = arith.constant 8.000000e+00 : f32
    %31 = vector.broadcast %cst_37 : f32 to vector<16x1xf32>
    %32 = arith.divf %30, %31 : vector<16x1xf32>
    %33 = vector.broadcast %32 : vector<16x1xf32> to vector<16x8xf32>
    %34 = arith.subf %28, %33 : vector<16x8xf32>
    %35 = arith.mulf %34, %34 : vector<16x8xf32>
    %cst_38 = arith.constant dense<0.000000e+00> : vector<16xf32>
    %36 = vector.multi_reduction <add>, %35, %cst_38 [1] : vector<16x8xf32> to vector<16xf32>
    %37 = vector.shape_cast %36 : vector<16xf32> to vector<16x1xf32>
    %cst_39 = arith.constant 8.000000e+00 : f32
    %38 = vector.broadcast %cst_39 : f32 to vector<16x1xf32>
    %39 = arith.divf %37, %38 : vector<16x1xf32>
    %40 = vector.broadcast %32 : vector<16x1xf32> to vector<16x8xf32>
    %41 = arith.subf %28, %40 : vector<16x8xf32>
    %cst_40 = arith.constant 9.99999993E-9 : f32
    %42 = vector.broadcast %cst_40 : f32 to vector<16x1xf32>
    %43 = arith.addf %39, %42 : vector<16x1xf32>
    %44 = math.rsqrt %43 : vector<16x1xf32>
    %45 = vector.broadcast %44 : vector<16x1xf32> to vector<16x8xf32>
    %46 = arith.mulf %41, %45 : vector<16x8xf32>
    %47 = vector.broadcast %5 : vector<1x8xf32> to vector<16x8xf32>
    %48 = arith.mulf %46, %47 : vector<16x8xf32>
    %49 = vector.broadcast %6 : vector<1x8xf32> to vector<16x8xf32>
    %50 = arith.addf %48, %49 : vector<16x8xf32>
    %cst_41 = arith.constant 0.000000e+00 : f32
    %51 = vector.broadcast %cst_41 : f32 to vector<16x8xf32>
    %52 = arith.maximumf %50, %51 : vector<16x8xf32>
    %c0_42 = arith.constant 0 : index
    %c0_43 = arith.constant 0 : index
    %c0_44 = arith.constant 0 : index
    %53 = vector.load %arg10[%c0_42, %c0_43, %c0_44] : memref<2x16x8xf32, #tpu.memory_space<vmem>>, vector<1x16x8xf32>
    %54 = vector.shape_cast %53 : vector<1x16x8xf32> to vector<16x8xf32>
    %55 = vector.shape_cast %52 : vector<16x8xf32> to vector<1x16x8xf32>
    tpu.vector_store %arg10[%c0_42, %c0_43, %c0_44], %55 {strides = array<i32>} : memref<2x16x8xf32, #tpu.memory_space<vmem>>, vector<1x16x8xf32>,
    %c8 = arith.constant 8 : index
    %c0_45 = arith.constant 0 : index
    %56 = vector.load %arg13[%c8, %c0_45] : memref<24x8xf32, #tpu.memory_space<vmem>>, vector<16x8xf32>
    tpu.vector_store %arg13[%c8, %c0_45], %52 {strides = array<i32>} : memref<24x8xf32, #tpu.memory_space<vmem>>, vector<16x8xf32>,
    %c0_46 = arith.constant 0 : index
    %c0_47 = arith.constant 0 : index
    %57 = vector.load %arg13[%c0_46, %c0_47] : memref<24x8xf32, #tpu.memory_space<vmem>>, vector<16x8xf32>
    %c0_48 = arith.constant 0 : index
    %c0_49 = arith.constant 0 : index
    %c0_50 = arith.constant 0 : index
    %58 = vector.load %arg6[%c0_48, %c0_49, %c0_50] : memref<3x8x8xf32, #tpu.memory_space<vmem>>, vector<1x8x8xf32>
    %59 = vector.shape_cast %58 : vector<1x8x8xf32> to vector<8x8xf32>
    %cst_51 = arith.constant dense<0.000000e+00> : vector<16x8xf32>
    %60 = tpu.matmul %57, %59, %cst_51 {dimension_numbers = #tpu.dot_dimension_numbers<[1], [0], [0], [1], [0, 0, 1, 1], [], []>} : vector<16x8xf32>, vector<8x8xf32>, vector<16x8xf32> -> vector<16x8xf32>
    %61 = vector.broadcast %7 : vector<1x8xf32> to vector<16x8xf32>
    %62 = arith.addf %61, %60 : vector<16x8xf32>
    %c4_52 = arith.constant 4 : index
    %c0_53 = arith.constant 0 : index
    %63 = vector.load %arg13[%c4_52, %c0_53] : memref<24x8xf32, #tpu.memory_space<vmem>>, vector<16x8xf32>
    %c1_54 = arith.constant 1 : index
    %c0_55 = arith.constant 0 : index
    %c0_56 = arith.constant 0 : index
    %64 = vector.load %arg6[%c1_54, %c0_55, %c0_56] : memref<3x8x8xf32, #tpu.memory_space<vmem>>, vector<1x8x8xf32>
    %65 = vector.shape_cast %64 : vector<1x8x8xf32> to vector<8x8xf32>
    %cst_57 = arith.constant dense<0.000000e+00> : vector<16x8xf32>
    %66 = tpu.matmul %63, %65, %cst_57 {dimension_numbers = #tpu.dot_dimension_numbers<[1], [0], [0], [1], [0, 0, 1, 1], [], []>} : vector<16x8xf32>, vector<8x8xf32>, vector<16x8xf32> -> vector<16x8xf32>
    %67 = arith.addf %62, %66 : vector<16x8xf32>
    %c8_58 = arith.constant 8 : index
    %c0_59 = arith.constant 0 : index
    %68 = vector.load %arg13[%c8_58, %c0_59] : memref<24x8xf32, #tpu.memory_space<vmem>>, vector<16x8xf32>
    %c2_60 = arith.constant 2 : index
    %c0_61 = arith.constant 0 : index
    %c0_62 = arith.constant 0 : index
    %69 = vector.load %arg6[%c2_60, %c0_61, %c0_62] : memref<3x8x8xf32, #tpu.memory_space<vmem>>, vector<1x8x8xf32>
    %70 = vector.shape_cast %69 : vector<1x8x8xf32> to vector<8x8xf32>
    %cst_63 = arith.constant dense<0.000000e+00> : vector<16x8xf32>
    %71 = tpu.matmul %68, %70, %cst_63 {dimension_numbers = #tpu.dot_dimension_numbers<[1], [0], [0], [1], [0, 0, 1, 1], [], []>} : vector<16x8xf32>, vector<8x8xf32>, vector<16x8xf32> -> vector<16x8xf32>
    %72 = arith.addf %67, %71 : vector<16x8xf32>
    %cst_64 = arith.constant dense<0.000000e+00> : vector<16xf32>
    %73 = vector.multi_reduction <add>, %72, %cst_64 [1] : vector<16x8xf32> to vector<16xf32>
    %74 = vector.shape_cast %73 : vector<16xf32> to vector<16x1xf32>
    %cst_65 = arith.constant 8.000000e+00 : f32
    %75 = vector.broadcast %cst_65 : f32 to vector<16x1xf32>
    %76 = arith.divf %74, %75 : vector<16x1xf32>
    %77 = vector.broadcast %76 : vector<16x1xf32> to vector<16x8xf32>
    %78 = arith.subf %72, %77 : vector<16x8xf32>
    %79 = arith.mulf %78, %78 : vector<16x8xf32>
    %cst_66 = arith.constant dense<0.000000e+00> : vector<16xf32>
    %80 = vector.multi_reduction <add>, %79, %cst_66 [1] : vector<16x8xf32> to vector<16xf32>
    %81 = vector.shape_cast %80 : vector<16xf32> to vector<16x1xf32>
    %cst_67 = arith.constant 8.000000e+00 : f32
    %82 = vector.broadcast %cst_67 : f32 to vector<16x1xf32>
    %83 = arith.divf %81, %82 : vector<16x1xf32>
    %84 = vector.broadcast %76 : vector<16x1xf32> to vector<16x8xf32>
    %85 = arith.subf %72, %84 : vector<16x8xf32>
    %cst_68 = arith.constant 9.99999993E-9 : f32
    %86 = vector.broadcast %cst_68 : f32 to vector<16x1xf32>
    %87 = arith.addf %83, %86 : vector<16x1xf32>
    %88 = math.rsqrt %87 : vector<16x1xf32>
    %89 = vector.broadcast %88 : vector<16x1xf32> to vector<16x8xf32>
    %90 = arith.mulf %85, %89 : vector<16x8xf32>
    %91 = vector.broadcast %8 : vector<1x8xf32> to vector<16x8xf32>
    %92 = arith.mulf %90, %91 : vector<16x8xf32>
    %93 = vector.broadcast %9 : vector<1x8xf32> to vector<16x8xf32>
    %94 = arith.addf %92, %93 : vector<16x8xf32>
    %cst_69 = arith.constant 0.000000e+00 : f32
    %95 = vector.broadcast %cst_69 : f32 to vector<16x8xf32>
    %96 = arith.maximumf %94, %95 : vector<16x8xf32>
    %97 = arith.addf %96, %11 : vector<16x8xf32>
    %c0_70 = arith.constant 0 : index
    %c0_71 = arith.constant 0 : index
    %c0_72 = arith.constant 0 : index
    %98 = vector.load %arg11[%c0_70, %c0_71, %c0_72] : memref<2x16x8xf32, #tpu.memory_space<vmem>>, vector<1x16x8xf32>
    %99 = vector.shape_cast %98 : vector<1x16x8xf32> to vector<16x8xf32>
    %100 = vector.shape_cast %97 : vector<16x8xf32> to vector<1x16x8xf32>
    tpu.vector_store %arg11[%c0_70, %c0_71, %c0_72], %100 {strides = array<i32>} : memref<2x16x8xf32, #tpu.memory_space<vmem>>, vector<1x16x8xf32>,
    %c1_73 = arith.constant 1 : index
    %c0_74 = arith.constant 0 : index
    %c0_75 = arith.constant 0 : index
    %101 = vector.load %arg1[%c1_73, %c0_74, %c0_75] : memref<2x16x8xf32, #tpu.memory_space<vmem>>, vector<1x16x8xf32>
    %102 = vector.shape_cast %101 : vector<1x16x8xf32> to vector<16x8xf32>
    %c4_76 = arith.constant 4 : index
    %c0_77 = arith.constant 0 : index
    %103 = vector.load %arg12[%c4_76, %c0_77] : memref<20x8xf32, #tpu.memory_space<vmem>>, vector<16x8xf32>
    tpu.vector_store %arg12[%c4_76, %c0_77], %102 {strides = array<i32>} : memref<20x8xf32, #tpu.memory_space<vmem>>, vector<16x8xf32>,
    %c0_78 = arith.constant 0 : index
    %c0_79 = arith.constant 0 : index
    %104 = vector.load %arg12[%c0_78, %c0_79] : memref<20x8xf32, #tpu.memory_space<vmem>>, vector<16x8xf32>
    %c0_80 = arith.constant 0 : index
    %c0_81 = arith.constant 0 : index
    %c0_82 = arith.constant 0 : index
    %105 = vector.load %arg2[%c0_80, %c0_81, %c0_82] : memref<3x8x8xf32, #tpu.memory_space<vmem>>, vector<1x8x8xf32>
    %106 = vector.shape_cast %105 : vector<1x8x8xf32> to vector<8x8xf32>
    %cst_83 = arith.constant dense<0.000000e+00> : vector<16x8xf32>
    %107 = tpu.matmul %104, %106, %cst_83 {dimension_numbers = #tpu.dot_dimension_numbers<[1], [0], [0], [1], [0, 0, 1, 1], [], []>} : vector<16x8xf32>, vector<8x8xf32>, vector<16x8xf32> -> vector<16x8xf32>
    %108 = vector.broadcast %4 : vector<1x8xf32> to vector<16x8xf32>
    %109 = arith.addf %108, %107 : vector<16x8xf32>
    %c2_84 = arith.constant 2 : index
    %c0_85 = arith.constant 0 : index
    %110 = vector.load %arg12[%c2_84, %c0_85] : memref<20x8xf32, #tpu.memory_space<vmem>>, vector<16x8xf32>
    %c1_86 = arith.constant 1 : index
    %c0_87 = arith.constant 0 : index
    %c0_88 = arith.constant 0 : index
    %111 = vector.load %arg2[%c1_86, %c0_87, %c0_88] : memref<3x8x8xf32, #tpu.memory_space<vmem>>, vector<1x8x8xf32>
    %112 = vector.shape_cast %111 : vector<1x8x8xf32> to vector<8x8xf32>
    %cst_89 = arith.constant dense<0.000000e+00> : vector<16x8xf32>
    %113 = tpu.matmul %110, %112, %cst_89 {dimension_numbers = #tpu.dot_dimension_numbers<[1], [0], [0], [1], [0, 0, 1, 1], [], []>} : vector<16x8xf32>, vector<8x8xf32>, vector<16x8xf32> -> vector<16x8xf32>
    %114 = arith.addf %109, %113 : vector<16x8xf32>
    %c4_90 = arith.constant 4 : index
    %c0_91 = arith.constant 0 : index
    %115 = vector.load %arg12[%c4_90, %c0_91] : memref<20x8xf32, #tpu.memory_space<vmem>>, vector<16x8xf32>
    %c2_92 = arith.constant 2 : index
    %c0_93 = arith.constant 0 : index
    %c0_94 = arith.constant 0 : index
    %116 = vector.load %arg2[%c2_92, %c0_93, %c0_94] : memref<3x8x8xf32, #tpu.memory_space<vmem>>, vector<1x8x8xf32>
    %117 = vector.shape_cast %116 : vector<1x8x8xf32> to vector<8x8xf32>
    %cst_95 = arith.constant dense<0.000000e+00> : vector<16x8xf32>
    %118 = tpu.matmul %115, %117, %cst_95 {dimension_numbers = #tpu.dot_dimension_numbers<[1], [0], [0], [1], [0, 0, 1, 1], [], []>} : vector<16x8xf32>, vector<8x8xf32>, vector<16x8xf32> -> vector<16x8xf32>
    %119 = arith.addf %114, %118 : vector<16x8xf32>
    %cst_96 = arith.constant dense<0.000000e+00> : vector<16xf32>
    %120 = vector.multi_reduction <add>, %119, %cst_96 [1] : vector<16x8xf32> to vector<16xf32>
    %121 = vector.shape_cast %120 : vector<16xf32> to vector<16x1xf32>
    %cst_97 = arith.constant 8.000000e+00 : f32
    %122 = vector.broadcast %cst_97 : f32 to vector<16x1xf32>
    %123 = arith.divf %121, %122 : vector<16x1xf32>
    %124 = vector.broadcast %123 : vector<16x1xf32> to vector<16x8xf32>
    %125 = arith.subf %119, %124 : vector<16x8xf32>
    %126 = arith.mulf %125, %125 : vector<16x8xf32>
    %cst_98 = arith.constant dense<0.000000e+00> : vector<16xf32>
    %127 = vector.multi_reduction <add>, %126, %cst_98 [1] : vector<16x8xf32> to vector<16xf32>
    %128 = vector.shape_cast %127 : vector<16xf32> to vector<16x1xf32>
    %cst_99 = arith.constant 8.000000e+00 : f32
    %129 = vector.broadcast %cst_99 : f32 to vector<16x1xf32>
    %130 = arith.divf %128, %129 : vector<16x1xf32>
    %131 = vector.broadcast %123 : vector<16x1xf32> to vector<16x8xf32>
    %132 = arith.subf %119, %131 : vector<16x8xf32>
    %cst_100 = arith.constant 9.99999993E-9 : f32
    %133 = vector.broadcast %cst_100 : f32 to vector<16x1xf32>
    %134 = arith.addf %130, %133 : vector<16x1xf32>
    %135 = math.rsqrt %134 : vector<16x1xf32>
    %136 = vector.broadcast %135 : vector<16x1xf32> to vector<16x8xf32>
    %137 = arith.mulf %132, %136 : vector<16x8xf32>
    %138 = vector.broadcast %5 : vector<1x8xf32> to vector<16x8xf32>
    %139 = arith.mulf %137, %138 : vector<16x8xf32>
    %140 = vector.broadcast %6 : vector<1x8xf32> to vector<16x8xf32>
    %141 = arith.addf %139, %140 : vector<16x8xf32>
    %cst_101 = arith.constant 0.000000e+00 : f32
    %142 = vector.broadcast %cst_101 : f32 to vector<16x8xf32>
    %143 = arith.maximumf %141, %142 : vector<16x8xf32>
    %c1_102 = arith.constant 1 : index
    %c0_103 = arith.constant 0 : index
    %c0_104 = arith.constant 0 : index
    %144 = vector.load %arg10[%c1_102, %c0_103, %c0_104] : memref<2x16x8xf32, #tpu.memory_space<vmem>>, vector<1x16x8xf32>
    %145 = vector.shape_cast %144 : vector<1x16x8xf32> to vector<16x8xf32>
    %146 = vector.shape_cast %143 : vector<16x8xf32> to vector<1x16x8xf32>
    tpu.vector_store %arg10[%c1_102, %c0_103, %c0_104], %146 {strides = array<i32>} : memref<2x16x8xf32, #tpu.memory_space<vmem>>, vector<1x16x8xf32>,
    %c8_105 = arith.constant 8 : index
    %c0_106 = arith.constant 0 : index
    %147 = vector.load %arg13[%c8_105, %c0_106] : memref<24x8xf32, #tpu.memory_space<vmem>>, vector<16x8xf32>
    tpu.vector_store %arg13[%c8_105, %c0_106], %143 {strides = array<i32>} : memref<24x8xf32, #tpu.memory_space<vmem>>, vector<16x8xf32>,
    %c0_107 = arith.constant 0 : index
    %c0_108 = arith.constant 0 : index
    %148 = vector.load %arg13[%c0_107, %c0_108] : memref<24x8xf32, #tpu.memory_space<vmem>>, vector<16x8xf32>
    %c0_109 = arith.constant 0 : index
    %c0_110 = arith.constant 0 : index
    %c0_111 = arith.constant 0 : index
    %149 = vector.load %arg6[%c0_109, %c0_110, %c0_111] : memref<3x8x8xf32, #tpu.memory_space<vmem>>, vector<1x8x8xf32>
    %150 = vector.shape_cast %149 : vector<1x8x8xf32> to vector<8x8xf32>
    %cst_112 = arith.constant dense<0.000000e+00> : vector<16x8xf32>
    %151 = tpu.matmul %148, %150, %cst_112 {dimension_numbers = #tpu.dot_dimension_numbers<[1], [0], [0], [1], [0, 0, 1, 1], [], []>} : vector<16x8xf32>, vector<8x8xf32>, vector<16x8xf32> -> vector<16x8xf32>
    %152 = vector.broadcast %7 : vector<1x8xf32> to vector<16x8xf32>
    %153 = arith.addf %152, %151 : vector<16x8xf32>
    %c4_113 = arith.constant 4 : index
    %c0_114 = arith.constant 0 : index
    %154 = vector.load %arg13[%c4_113, %c0_114] : memref<24x8xf32, #tpu.memory_space<vmem>>, vector<16x8xf32>
    %c1_115 = arith.constant 1 : index
    %c0_116 = arith.constant 0 : index
    %c0_117 = arith.constant 0 : index
    %155 = vector.load %arg6[%c1_115, %c0_116, %c0_117] : memref<3x8x8xf32, #tpu.memory_space<vmem>>, vector<1x8x8xf32>
    %156 = vector.shape_cast %155 : vector<1x8x8xf32> to vector<8x8xf32>
    %cst_118 = arith.constant dense<0.000000e+00> : vector<16x8xf32>
    %157 = tpu.matmul %154, %156, %cst_118 {dimension_numbers = #tpu.dot_dimension_numbers<[1], [0], [0], [1], [0, 0, 1, 1], [], []>} : vector<16x8xf32>, vector<8x8xf32>, vector<16x8xf32> -> vector<16x8xf32>
    %158 = arith.addf %153, %157 : vector<16x8xf32>
    %c8_119 = arith.constant 8 : index
    %c0_120 = arith.constant 0 : index
    %159 = vector.load %arg13[%c8_119, %c0_120] : memref<24x8xf32, #tpu.memory_space<vmem>>, vector<16x8xf32>
    %c2_121 = arith.constant 2 : index
    %c0_122 = arith.constant 0 : index
    %c0_123 = arith.constant 0 : index
    %160 = vector.load %arg6[%c2_121, %c0_122, %c0_123] : memref<3x8x8xf32, #tpu.memory_space<vmem>>, vector<1x8x8xf32>
    %161 = vector.shape_cast %160 : vector<1x8x8xf32> to vector<8x8xf32>
    %cst_124 = arith.constant dense<0.000000e+00> : vector<16x8xf32>
    %162 = tpu.matmul %159, %161, %cst_124 {dimension_numbers = #tpu.dot_dimension_numbers<[1], [0], [0], [1], [0, 0, 1, 1], [], []>} : vector<16x8xf32>, vector<8x8xf32>, vector<16x8xf32> -> vector<16x8xf32>
    %163 = arith.addf %158, %162 : vector<16x8xf32>
    %cst_125 = arith.constant dense<0.000000e+00> : vector<16xf32>
    %164 = vector.multi_reduction <add>, %163, %cst_125 [1] : vector<16x8xf32> to vector<16xf32>
    %165 = vector.shape_cast %164 : vector<16xf32> to vector<16x1xf32>
    %cst_126 = arith.constant 8.000000e+00 : f32
    %166 = vector.broadcast %cst_126 : f32 to vector<16x1xf32>
    %167 = arith.divf %165, %166 : vector<16x1xf32>
    %168 = vector.broadcast %167 : vector<16x1xf32> to vector<16x8xf32>
    %169 = arith.subf %163, %168 : vector<16x8xf32>
    %170 = arith.mulf %169, %169 : vector<16x8xf32>
    %cst_127 = arith.constant dense<0.000000e+00> : vector<16xf32>
    %171 = vector.multi_reduction <add>, %170, %cst_127 [1] : vector<16x8xf32> to vector<16xf32>
    %172 = vector.shape_cast %171 : vector<16xf32> to vector<16x1xf32>
    %cst_128 = arith.constant 8.000000e+00 : f32
    %173 = vector.broadcast %cst_128 : f32 to vector<16x1xf32>
    %174 = arith.divf %172, %173 : vector<16x1xf32>
    %175 = vector.broadcast %167 : vector<16x1xf32> to vector<16x8xf32>
    %176 = arith.subf %163, %175 : vector<16x8xf32>
    %cst_129 = arith.constant 9.99999993E-9 : f32
    %177 = vector.broadcast %cst_129 : f32 to vector<16x1xf32>
    %178 = arith.addf %174, %177 : vector<16x1xf32>
    %179 = math.rsqrt %178 : vector<16x1xf32>
    %180 = vector.broadcast %179 : vector<16x1xf32> to vector<16x8xf32>
    %181 = arith.mulf %176, %180 : vector<16x8xf32>
    %182 = vector.broadcast %8 : vector<1x8xf32> to vector<16x8xf32>
    %183 = arith.mulf %181, %182 : vector<16x8xf32>
    %184 = vector.broadcast %9 : vector<1x8xf32> to vector<16x8xf32>
    %185 = arith.addf %183, %184 : vector<16x8xf32>
    %cst_130 = arith.constant 0.000000e+00 : f32
    %186 = vector.broadcast %cst_130 : f32 to vector<16x8xf32>
    %187 = arith.maximumf %185, %186 : vector<16x8xf32>
    %188 = arith.addf %187, %102 : vector<16x8xf32>
    %c1_131 = arith.constant 1 : index
    %c0_132 = arith.constant 0 : index
    %c0_133 = arith.constant 0 : index
    %189 = vector.load %arg11[%c1_131, %c0_132, %c0_133] : memref<2x16x8xf32, #tpu.memory_space<vmem>>, vector<1x16x8xf32>
    %190 = vector.shape_cast %189 : vector<1x16x8xf32> to vector<16x8xf32>
    %191 = vector.shape_cast %188 : vector<16x8xf32> to vector<1x16x8xf32>
    tpu.vector_store %arg11[%c1_131, %c0_132, %c0_133], %191 {strides = array<i32>} : memref<2x16x8xf32, #tpu.memory_space<vmem>>, vector<1x16x8xf32>,
    return
  }
  func.func @transform_0(%arg0: i32) -> (i32, i32, i32) {
    %c0_i32 = arith.constant 0 : i32
    %c0_i32_0 = arith.constant 0 : i32
    %c0_i32_1 = arith.constant 0 : i32
    return %arg0, %c0_i32, %c0_i32_0 : i32, i32, i32
  }
  func.func @transform_1(%arg0: i32) -> (i32, i32, i32) {
    %c0_i32 = arith.constant 0 : i32
    %c0_i32_0 = arith.constant 0 : i32
    %c0_i32_1 = arith.constant 0 : i32
    %c0_i32_2 = arith.constant 0 : i32
    return %c0_i32, %c0_i32_0, %c0_i32_1 : i32, i32, i32
  }
  func.func @transform_2(%arg0: i32) -> (i32, i32) {
    %c0_i32 = arith.constant 0 : i32
    %c0_i32_0 = arith.constant 0 : i32
    %c0_i32_1 = arith.constant 0 : i32
    return %c0_i32, %c0_i32_0 : i32, i32
  }
  func.func @transform_3(%arg0: i32) -> (i32, i32) {
    %c0_i32 = arith.constant 0 : i32
    %c0_i32_0 = arith.constant 0 : i32
    %c0_i32_1 = arith.constant 0 : i32
    return %c0_i32, %c0_i32_0 : i32, i32
  }
  func.func @transform_4(%arg0: i32) -> (i32, i32) {
    %c0_i32 = arith.constant 0 : i32
    %c0_i32_0 = arith.constant 0 : i32
    %c0_i32_1 = arith.constant 0 : i32
    return %c0_i32, %c0_i32_0 : i32, i32
  }
  func.func @transform_5(%arg0: i32) -> (i32, i32, i32) {
    %c0_i32 = arith.constant 0 : i32
    %c0_i32_0 = arith.constant 0 : i32
    %c0_i32_1 = arith.constant 0 : i32
    %c0_i32_2 = arith.constant 0 : i32
    return %c0_i32, %c0_i32_0, %c0_i32_1 : i32, i32, i32
  }
  func.func @transform_6(%arg0: i32) -> (i32, i32) {
    %c0_i32 = arith.constant 0 : i32
    %c0_i32_0 = arith.constant 0 : i32
    %c0_i32_1 = arith.constant 0 : i32
    return %c0_i32, %c0_i32_0 : i32, i32
  }
  func.func @transform_7(%arg0: i32) -> (i32, i32) {
    %c0_i32 = arith.constant 0 : i32
    %c0_i32_0 = arith.constant 0 : i32
    %c0_i32_1 = arith.constant 0 : i32
    return %c0_i32, %c0_i32_0 : i32, i32
  }
  func.func @transform_8(%arg0: i32) -> (i32, i32) {
    %c0_i32 = arith.constant 0 : i32
    %c0_i32_0 = arith.constant 0 : i32
    %c0_i32_1 = arith.constant 0 : i32
    return %c0_i32, %c0_i32_0 : i32, i32
  }
  func.func @transform_9(%arg0: i32) -> (i32, i32, i32) {
    %c0_i32 = arith.constant 0 : i32
    %c0_i32_0 = arith.constant 0 : i32
    %c0_i32_1 = arith.constant 0 : i32
    return %arg0, %c0_i32, %c0_i32_0 : i32, i32, i32
  }
  func.func @transform_10(%arg0: i32) -> (i32, i32, i32) {
    %c0_i32 = arith.constant 0 : i32
    %c0_i32_0 = arith.constant 0 : i32
    %c0_i32_1 = arith.constant 0 : i32
    return %arg0, %c0_i32, %c0_i32_0 : i32, i32, i32
  }
}

</mosaic_0001>

<llo_original>
// kernel: tpu_custom_call.1
$region0: #{tpu_custom_call.1}
  #allocation0 [shape = 'u32[]', space=smem, size = 0x4, offset = 0x4, fixed_abs, tag = 'smem constant byte address 0x4 - core index']
  #allocation1 [shape = 'u32[144,128]{1,0:T(1,128)}', space=vmem, size = 0x12000, scoped, tag = 'internal scratch']
  #allocation2 [shape = 'f32[20,8]{1,0:T(8,128)}', space=vmem, size = 0x3000, scoped, tag = 'scratch operand']
  #allocation3 [shape = 'f32[24,8]{1,0:T(8,128)}', space=vmem, size = 0x3000, scoped, tag = 'scratch operand']
  %s0 = inlined_call_operand.vmem [shape: f32[2,16,8], index: 0, kind: input, shape index: {}]
  %s1 = inlined_call_operand.vmem [shape: f32[3,8,8], index: 1, kind: input, shape index: {}]
  %s2 = inlined_call_operand.vmem [shape: f32[1,8], index: 2, kind: input, shape index: {}]
  %s3 = inlined_call_operand.vmem [shape: f32[1,8], index: 3, kind: input, shape index: {}]
  %s4 = inlined_call_operand.vmem [shape: f32[1,8], index: 4, kind: input, shape index: {}]
  %s5 = inlined_call_operand.vmem [shape: f32[3,8,8], index: 5, kind: input, shape index: {}]
  %s6 = inlined_call_operand.vmem [shape: f32[1,8], index: 6, kind: input, shape index: {}]
  %s7 = inlined_call_operand.vmem [shape: f32[1,8], index: 7, kind: input, shape index: {}]
  %s8 = inlined_call_operand.vmem [shape: f32[1,8], index: 8, kind: input, shape index: {}]
  %s9 = inlined_call_operand.vmem [shape: f32[2,16,8], index: 9, kind: output, shape index: {0}]
  %s10 = inlined_call_operand.vmem [shape: f32[2,16,8], index: 10, kind: output, shape index: {1}]
  %11 = xla_tuple %s9, %s10
  %s12 = sld [smem:[#allocation0]]
  $region54: #{tpu_custom_call.1} parent=0
    _
  %s14 = ssub.s32 1, %s12
  %s15 = scalar_select 0, %s14, %s12
  // Predicated region
  $region2: #{tpu_custom_call.1} parent=0 // pred_check
    _
  $region3: #{tpu_custom_call.1} parent=0 // pred_check_branch
    %17 = sbr.rel (0) target = $region5
  $region4: #{tpu_custom_call.1} parent=0 // pred_region
    _
  $region5: #{tpu_custom_call.1} parent=0 // pred_fallthru
    _
  // Predicated region
  $region6: #{tpu_custom_call.1} parent=0 // pred_check
    _
  $region7: #{tpu_custom_call.1} parent=0 // pred_check_branch
    %19 = sbr.rel (0) target = $region9
  $region8: #{tpu_custom_call.1} parent=0 // pred_region
    _
  $region9: #{tpu_custom_call.1} parent=0 // pred_fallthru
    _
  // Predicated region
  $region10: #{tpu_custom_call.1} parent=0 // pred_check
    _
  $region11: #{tpu_custom_call.1} parent=0 // pred_check_branch
    %21 = sbr.rel (0) target = $region13
  $region12: #{tpu_custom_call.1} parent=0 // pred_region
    _
  $region13: #{tpu_custom_call.1} parent=0 // pred_fallthru
    _
  // Predicated region
  $region14: #{tpu_custom_call.1} parent=0 // pred_check
    _
  $region15: #{tpu_custom_call.1} parent=0 // pred_check_branch
    %23 = sbr.rel (0) target = $region17
  $region16: #{tpu_custom_call.1} parent=0 // pred_region
    _
  $region17: #{tpu_custom_call.1} parent=0 // pred_fallthru
    _
  // Predicated region
  $region18: #{tpu_custom_call.1} parent=0 // pred_check
    _
  $region19: #{tpu_custom_call.1} parent=0 // pred_check_branch
    %25 = sbr.rel (0) target = $region21
  $region20: #{tpu_custom_call.1} parent=0 // pred_region
    _
  $region21: #{tpu_custom_call.1} parent=0 // pred_fallthru
    _
  // Predicated region
  $region22: #{tpu_custom_call.1} parent=0 // pred_check
    _
  $region23: #{tpu_custom_call.1} parent=0 // pred_check_branch
    %27 = sbr.rel (0) target = $region25
  $region24: #{tpu_custom_call.1} parent=0 // pred_region
    _
  $region25: #{tpu_custom_call.1} parent=0 // pred_fallthru
    _
  // Predicated region
  $region26: #{tpu_custom_call.1} parent=0 // pred_check
    _
  $region27: #{tpu_custom_call.1} parent=0 // pred_check_branch
    %29 = sbr.rel (0) target = $region29
  $region28: #{tpu_custom_call.1} parent=0 // pred_region
    _
  $region29: #{tpu_custom_call.1} parent=0 // pred_fallthru
    _
  // Predicated region
  $region30: #{tpu_custom_call.1} parent=0 // pred_check
    _
  $region31: #{tpu_custom_call.1} parent=0 // pred_check_branch
    %31 = sbr.rel (0) target = $region33
  $region32: #{tpu_custom_call.1} parent=0 // pred_region
    _
  $region33: #{tpu_custom_call.1} parent=0 // pred_fallthru
    _
  // Predicated region
  $region34: #{tpu_custom_call.1} parent=0 // pred_check
    _
  $region35: #{tpu_custom_call.1} parent=0 // pred_check_branch
    %33 = sbr.rel (0) target = $region37
  $region36: #{tpu_custom_call.1} parent=0 // pred_region
    _
  $region37: #{tpu_custom_call.1} parent=0 // pred_fallthru
    _
  %vm34 = vcmask 60416
  %35 = vst.msk [vmem:[#allocation2] sm:$0xf] %vm34, 0.0
  %vm36 = vcmask 64512
  %37 = vst.msk [vmem:[#allocation3] sm:$0xff] %vm36, 0.0
  %v38 = vld [vmem:[%s2] sm:$0x1]
  %v39 = vld [vmem:[%s3] sm:$0x1]
  %v40 = vld [vmem:[%s4] sm:$0x1]
  %v41 = vld [vmem:[%s6] sm:$0x1]
  %v42 = vld [vmem:[%s7] sm:$0x1]
  %v43 = vld [vmem:[%s8] sm:$0x1]
  %v44 = vld [vmem:[%s0] sm:$0xff]
  %v45 = vld [vmem:[%s0 + $0x8] sm:$0xff]
  %46 = vst.msk [vmem:[#allocation2 + $0x4] sm:$0xff] %vm36, %v44
  %47 = vst.msk [vmem:[#allocation2 + $0xc] sm:$0xff] %vm36, %v45
  %v48 = vld [vmem:[#allocation2] sm:$0xff]
  %v49 = vld [vmem:[#allocation2 + $0x8] sm:$0xff]
  %v50 = vld [vmem:[%s1] sm:$0xff]
  %v52 = vsel %vm36, %v48, 0
  %v55 = vsel %vm36, %v49, 0
  %57 = vmatprep.subr.mxu0 0.0
  %58 = vmatpush1.msra.mxu0 %v50
  %59 = vmatprep.subr.mxu0 0.0
  %60 = vmatpush1.msra.mxu0 0.0
  %61 = vmatprep.subr.mxu0 0.0
  %62 = vmatpush1.msra.mxu0 0.0
  %63 = vmatprep.subr.mxu0 0.0
  %64 = vmatpush1.msra.mxu0 0.0
  %65 = vmatprep.subr.mxu0 0.0
  %66 = vmatpush1.msra.mxu0 0.0
  %67 = vmatprep.subr.mxu0 0.0
  %68 = vmatpush1.msra.mxu0 0.0
  %69 = vmatprep.subr.mxu0 0.0
  %70 = vmatpush1.msra.mxu0 0.0
  %71 = vmatprep.subr.mxu0 0.0
  %72 = vmatpush1.msra.mxu0 0.0
  %73 = vmatprep.subr.mxu0 0.0
  %74 = vmatpush1.msra.mxu0 0.0
  %75 = vmatprep.subr.mxu0 0.0
  %76 = vmatpush1.msra.mxu0 0.0
  %77 = vmatprep.subr.mxu0 0.0
  %78 = vmatpush1.msra.mxu0 0.0
  %79 = vmatprep.subr.mxu0 0.0
  %80 = vmatpush1.msra.mxu0 0.0
  %81 = vmatprep.subr.mxu0 0.0
  %82 = vmatpush1.msra.mxu0 0.0
  %83 = vmatprep.subr.mxu0 0.0
  %84 = vmatpush1.msra.mxu0 0.0
  %85 = vmatprep.subr.mxu0 0.0
  %86 = vmatpush1.msra.mxu0 0.0
  %87 = vmatprep.subr.mxu0 0.0
  %88 = vmatpush1.msra.mxu0 0.0
  %89 = vmatprep.subr.mxu0 0.0
  %90 = vmatpush1.msra.mxu0 0.0
  %91 = vmatprep.subr.mxu0 0.0
  %92 = vmatpush1.msra.mxu0 0.0
  %93 = vmatprep.subr.mxu0 0.0
  %94 = vmatpush1.msra.mxu0 0.0
  %95 = vmatprep.subr.mxu0 0.0
  %96 = vmatpush1.msra.mxu0 0.0
  %97 = vmatprep.subr.mxu0 0.0
  %98 = vmatpush1.msra.mxu0 0.0
  %99 = vmatprep.subr.mxu0 0.0
  %100 = vmatpush1.msra.mxu0 0.0
  %101 = vmatprep.subr.mxu0 0.0
  %102 = vmatpush1.msra.mxu0 0.0
  %103 = vmatprep.subr.mxu0 0.0
  %104 = vmatpush1.msra.mxu0 0.0
  %105 = vmatprep.subr.mxu0 0.0
  %106 = vmatpush1.msra.mxu0 0.0
  %107 = vmatprep.subr.mxu0 0.0
  %108 = vmatpush1.msra.mxu0 0.0
  %109 = vmatprep.subr.mxu0 0.0
  %110 = vmatpush1.msra.mxu0 0.0
  %111 = vmatprep.subr.mxu0 0.0
  %112 = vmatpush1.msra.mxu0 0.0
  %113 = vmatprep.subr.mxu0 0.0
  %114 = vmatpush1.msra.mxu0 0.0
  %115 = vmatprep.subr.mxu0 0.0
  %116 = vmatpush1.msra.mxu0 0.0
  %117 = vmatprep.subr.mxu0 0.0
  %118 = vmatpush1.msra.mxu0 0.0
  %119 = vmatprep.subr.mxu0 0.0
  %120 = vmatpush1.msra.mxu0 0.0
  %121 = vmatprep.mubr.f32.mxu0 0.0
  %122 = vmatmul.mubr.f32.gmra.mrb[0].mxu0 %v52
  %v123 = vpop.f32.mrb[0].mxu0
  %v124 = vadd.f32 0.0, %v123
  %v125 = vpop.f32.mrb[0].mxu0
  %126 = vmatprep.mubr.f32.mxu0 0.0
  %127 = vmatmul.mubr.f32.gmra.mrb[0].mxu0 %v55
  %v128 = vpop.f32.mrb[0].mxu0
  %v129 = vadd.f32 0.0, %v128
  %v130 = vpop.f32.mrb[0].mxu0
  %131 = vdwg.mxu0
  %v133 = vlaneseq
  %v134 = vshrl.u32 %v133, 7
  %v135 = vsub.s32 0, %v134
  %v136 = vrot.slane %v38, %v135
  %v138 = vadd.f32 %v136, %v124
  %v139 = vadd.f32 %v136, %v129
  %v140 = vld [vmem:[#allocation2 + $0x2] sm:$0xff]
  %v141 = vld [vmem:[#allocation2 + $0xa] sm:$0xff]
  %s142 = scalar_lea.vmem %s1, 8
  %v143 = vld [vmem:[%s142] sm:$0xff]
  %v145 = vsel %vm36, %v140, 0
  %v148 = vsel %vm36, %v141, 0
  %150 = vmatprep.subr.mxu0 0.0
  %151 = vmatpush1.msra.mxu0 %v143
  %152 = vmatprep.subr.mxu0 0.0
  %153 = vmatpush1.msra.mxu0 0.0
  %154 = vmatprep.subr.mxu0 0.0
  %155 = vmatpush1.msra.mxu0 0.0
  %156 = vmatprep.subr.mxu0 0.0
  %157 = vmatpush1.msra.mxu0 0.0
  %158 = vmatprep.subr.mxu0 0.0
  %159 = vmatpush1.msra.mxu0 0.0
  %160 = vmatprep.subr.mxu0 0.0
  %161 = vmatpush1.msra.mxu0 0.0
  %162 = vmatprep.subr.mxu0 0.0
  %163 = vmatpush1.msra.mxu0 0.0
  %164 = vmatprep.subr.mxu0 0.0
  %165 = vmatpush1.msra.mxu0 0.0
  %166 = vmatprep.subr.mxu0 0.0
  %167 = vmatpush1.msra.mxu0 0.0
  %168 = vmatprep.subr.mxu0 0.0
  %169 = vmatpush1.msra.mxu0 0.0
  %170 = vmatprep.subr.mxu0 0.0
  %171 = vmatpush1.msra.mxu0 0.0
  %172 = vmatprep.subr.mxu0 0.0
  %173 = vmatpush1.msra.mxu0 0.0
  %174 = vmatprep.subr.mxu0 0.0
  %175 = vmatpush1.msra.mxu0 0.0
  %176 = vmatprep.subr.mxu0 0.0
  %177 = vmatpush1.msra.mxu0 0.0
  %178 = vmatprep.subr.mxu0 0.0
  %179 = vmatpush1.msra.mxu0 0.0
  %180 = vmatprep.subr.mxu0 0.0
  %181 = vmatpush1.msra.mxu0 0.0
  %182 = vmatprep.subr.mxu0 0.0
  %183 = vmatpush1.msra.mxu0 0.0
  %184 = vmatprep.subr.mxu0 0.0
  %185 = vmatpush1.msra.mxu0 0.0
  %186 = vmatprep.subr.mxu0 0.0
  %187 = vmatpush1.msra.mxu0 0.0
  %188 = vmatprep.subr.mxu0 0.0
  %189 = vmatpush1.msra.mxu0 0.0
  %190 = vmatprep.subr.mxu0 0.0
  %191 = vmatpush1.msra.mxu0 0.0
  %192 = vmatprep.subr.mxu0 0.0
  %193 = vmatpush1.msra.mxu0 0.0
  %194 = vmatprep.subr.mxu0 0.0
  %195 = vmatpush1.msra.mxu0 0.0
  %196 = vmatprep.subr.mxu0 0.0
  %197 = vmatpush1.msra.mxu0 0.0
  %198 = vmatprep.subr.mxu0 0.0
  %199 = vmatpush1.msra.mxu0 0.0
  %200 = vmatprep.subr.mxu0 0.0
  %201 = vmatpush1.msra.mxu0 0.0
  %202 = vmatprep.subr.mxu0 0.0
  %203 = vmatpush1.msra.mxu0 0.0
  %204 = vmatprep.subr.mxu0 0.0
  %205 = vmatpush1.msra.mxu0 0.0
  %206 = vmatprep.subr.mxu0 0.0
  %207 = vmatpush1.msra.mxu0 0.0
  %208 = vmatprep.subr.mxu0 0.0
  %209 = vmatpush1.msra.mxu0 0.0
  %210 = vmatprep.subr.mxu0 0.0
  %211 = vmatpush1.msra.mxu0 0.0
  %212 = vmatprep.subr.mxu0 0.0
  %213 = vmatpush1.msra.mxu0 0.0
  %214 = vmatprep.mubr.f32.mxu0 0.0
  %215 = vmatmul.mubr.f32.gmra.mrb[0].mxu0 %v145
  %v216 = vpop.f32.mrb[0].mxu0
  %v217 = vadd.f32 0.0, %v216
  %v218 = vpop.f32.mrb[0].mxu0
  %219 = vmatprep.mubr.f32.mxu0 0.0
  %220 = vmatmul.mubr.f32.gmra.mrb[0].mxu0 %v148
  %v221 = vpop.f32.mrb[0].mxu0
  %v222 = vadd.f32 0.0, %v221
  %v223 = vpop.f32.mrb[0].mxu0
  %224 = vdwg.mxu0
  %v225 = vadd.f32 %v138, %v217
  %v226 = vadd.f32 %v139, %v222
  %v227 = vld [vmem:[#allocation2 + $0x4] sm:$0xff]
  %v228 = vld [vmem:[#allocation2 + $0xc] sm:$0xff]
  %s229 = scalar_lea.vmem %s1, 16
  %v230 = vld [vmem:[%s229] sm:$0xff]
  %v232 = vsel %vm36, %v227, 0
  %v235 = vsel %vm36, %v228, 0
  %237 = vmatprep.subr.mxu0 0.0
  %238 = vmatpush1.msra.mxu0 %v230
  %239 = vmatprep.subr.mxu0 0.0
  %240 = vmatpush1.msra.mxu0 0.0
  %241 = vmatprep.subr.mxu0 0.0
  %242 = vmatpush1.msra.mxu0 0.0
  %243 = vmatprep.subr.mxu0 0.0
  %244 = vmatpush1.msra.mxu0 0.0
  %245 = vmatprep.subr.mxu0 0.0
  %246 = vmatpush1.msra.mxu0 0.0
  %247 = vmatprep.subr.mxu0 0.0
  %248 = vmatpush1.msra.mxu0 0.0
  %249 = vmatprep.subr.mxu0 0.0
  %250 = vmatpush1.msra.mxu0 0.0
  %251 = vmatprep.subr.mxu0 0.0
  %252 = vmatpush1.msra.mxu0 0.0
  %253 = vmatprep.subr.mxu0 0.0
  %254 = vmatpush1.msra.mxu0 0.0
  %255 = vmatprep.subr.mxu0 0.0
  %256 = vmatpush1.msra.mxu0 0.0
  %257 = vmatprep.subr.mxu0 0.0
  %258 = vmatpush1.msra.mxu0 0.0
  %259 = vmatprep.subr.mxu0 0.0
  %260 = vmatpush1.msra.mxu0 0.0
  %261 = vmatprep.subr.mxu0 0.0
  %262 = vmatpush1.msra.mxu0 0.0
  %263 = vmatprep.subr.mxu0 0.0
  %264 = vmatpush1.msra.mxu0 0.0
  %265 = vmatprep.subr.mxu0 0.0
  %266 = vmatpush1.msra.mxu0 0.0
  %267 = vmatprep.subr.mxu0 0.0
  %268 = vmatpush1.msra.mxu0 0.0
  %269 = vmatprep.subr.mxu0 0.0
  %270 = vmatpush1.msra.mxu0 0.0
  %271 = vmatprep.subr.mxu0 0.0
  %272 = vmatpush1.msra.mxu0 0.0
  %273 = vmatprep.subr.mxu0 0.0
  %274 = vmatpush1.msra.mxu0 0.0
  %275 = vmatprep.subr.mxu0 0.0
  %276 = vmatpush1.msra.mxu0 0.0
  %277 = vmatprep.subr.mxu0 0.0
  %278 = vmatpush1.msra.mxu0 0.0
  %279 = vmatprep.subr.mxu0 0.0
  %280 = vmatpush1.msra.mxu0 0.0
  %281 = vmatprep.subr.mxu0 0.0
  %282 = vmatpush1.msra.mxu0 0.0
  %283 = vmatprep.subr.mxu0 0.0
  %284 = vmatpush1.msra.mxu0 0.0
  %285 = vmatprep.subr.mxu0 0.0
  %286 = vmatpush1.msra.mxu0 0.0
  %287 = vmatprep.subr.mxu0 0.0
  %288 = vmatpush1.msra.mxu0 0.0
  %289 = vmatprep.subr.mxu0 0.0
  %290 = vmatpush1.msra.mxu0 0.0
  %291 = vmatprep.subr.mxu0 0.0
  %292 = vmatpush1.msra.mxu0 0.0
  %293 = vmatprep.subr.mxu0 0.0
  %294 = vmatpush1.msra.mxu0 0.0
  %295 = vmatprep.subr.mxu0 0.0
  %296 = vmatpush1.msra.mxu0 0.0
  %297 = vmatprep.subr.mxu0 0.0
  %298 = vmatpush1.msra.mxu0 0.0
  %299 = vmatprep.subr.mxu0 0.0
  %300 = vmatpush1.msra.mxu0 0.0
  %301 = vmatprep.mubr.f32.mxu0 0.0
  %302 = vmatmul.mubr.f32.gmra.mrb[0].mxu0 %v232
  %v303 = vpop.f32.mrb[0].mxu0
  %v304 = vadd.f32 0.0, %v303
  %v305 = vpop.f32.mrb[0].mxu0
  %306 = vmatprep.mubr.f32.mxu0 0.0
  %307 = vmatmul.mubr.f32.gmra.mrb[0].mxu0 %v235
  %v308 = vpop.f32.mrb[0].mxu0
  %v309 = vadd.f32 0.0, %v308
  %v310 = vpop.f32.mrb[0].mxu0
  %311 = vdwg.mxu0
  %v312 = vadd.f32 %v225, %v304
  %v313 = vadd.f32 %v226, %v309
  %v314 = vsel %vm36, %v312, 0.0
  %315 = vadd.xlane.f32.xlu0 %v314
  %v316 = vpop.xlane.xlu0 %315
  %v317 = vsel %vm36, %v313, 0.0
  %318 = vadd.xlane.f32.xlu0 %v317
  %v319 = vpop.xlane.xlu0 %318
  %v320 = vrcp.pop 8.0
  %v321 = vmul.f32 %v316, %v320
  %v322 = vmul.f32 %v319, %v320
  %v323 = vsub.f32 %v312, %v321
  %v324 = vsub.f32 %v313, %v322
  %v325 = vmul.f32 %v323, %v323
  %v326 = vmul.f32 %v324, %v324
  %v327 = vsel %vm36, %v325, 0.0
  %328 = vadd.xlane.f32.xlu0 %v327
  %v329 = vpop.xlane.xlu0 %328
  %v330 = vsel %vm36, %v326, 0.0
  %331 = vadd.xlane.f32.xlu0 %v330
  %v332 = vpop.xlane.xlu0 %331
  %v333 = vmul.f32 %v329, %v320
  %v334 = vmul.f32 %v332, %v320
  %v335 = vadd.f32 %v333, 1e-08
  %v336 = vadd.f32 %v334, 1e-08
  %v337 = vrsqrt.pop %v335
  %v338 = vrsqrt.pop %v336
  %v339 = vmul.f32 %v323, %v337
  %v340 = vmul.f32 %v324, %v338
  %v342 = vlaneseq
  %v343 = vshrl.u32 %v342, 7
  %v344 = vsub.s32 0, %v343
  %v345 = vrot.slane %v39, %v344
  %v347 = vmul.f32 %v339, %v345
  %v348 = vmul.f32 %v340, %v345
  %v350 = vlaneseq
  %v351 = vshrl.u32 %v350, 7
  %v352 = vsub.s32 0, %v351
  %v353 = vrot.slane %v40, %v352
  %v355 = vadd.f32 %v347, %v353
  %v356 = vadd.f32 %v348, %v353
  %v357 = vmax.f32 %v355, 0.0
  %v358 = vmax.f32 %v356, 0.0
  %359 = vst.msk [vmem:[%s9] sm:$0xff] %vm36, %v357
  %360 = vst.msk [vmem:[%s9 + $0x8] sm:$0xff] %vm36, %v358
  %361 = vst.msk [vmem:[#allocation3 + $0x8] sm:$0xff] %vm36, %v357
  %362 = vst.msk [vmem:[#allocation3 + $0x10] sm:$0xff] %vm36, %v358
  %v363 = vld [vmem:[#allocation3] sm:$0xff]
  %v364 = vld [vmem:[#allocation3 + $0x8] sm:$0xff]
  %v365 = vld [vmem:[%s5] sm:$0xff]
  %v367 = vsel %vm36, %v363, 0
  %v370 = vsel %vm36, %v364, 0
  %372 = vmatprep.subr.mxu0 0.0
  %373 = vmatpush1.msra.mxu0 %v365
  %374 = vmatprep.subr.mxu0 0.0
  %375 = vmatpush1.msra.mxu0 0.0
  %376 = vmatprep.subr.mxu0 0.0
  %377 = vmatpush1.msra.mxu0 0.0
  %378 = vmatprep.subr.mxu0 0.0
  %379 = vmatpush1.msra.mxu0 0.0
  %380 = vmatprep.subr.mxu0 0.0
  %381 = vmatpush1.msra.mxu0 0.0
  %382 = vmatprep.subr.mxu0 0.0
  %383 = vmatpush1.msra.mxu0 0.0
  %384 = vmatprep.subr.mxu0 0.0
  %385 = vmatpush1.msra.mxu0 0.0
  %386 = vmatprep.subr.mxu0 0.0
  %387 = vmatpush1.msra.mxu0 0.0
  %388 = vmatprep.subr.mxu0 0.0
  %389 = vmatpush1.msra.mxu0 0.0
  %390 = vmatprep.subr.mxu0 0.0
  %391 = vmatpush1.msra.mxu0 0.0
  %392 = vmatprep.subr.mxu0 0.0
  %393 = vmatpush1.msra.mxu0 0.0
  %394 = vmatprep.subr.mxu0 0.0
  %395 = vmatpush1.msra.mxu0 0.0
  %396 = vmatprep.subr.mxu0 0.0
  %397 = vmatpush1.msra.mxu0 0.0
  %398 = vmatprep.subr.mxu0 0.0
  %399 = vmatpush1.msra.mxu0 0.0
  %400 = vmatprep.subr.mxu0 0.0
  %401 = vmatpush1.msra.mxu0 0.0
  %402 = vmatprep.subr.mxu0 0.0
  %403 = vmatpush1.msra.mxu0 0.0
  %404 = vmatprep.subr.mxu0 0.0
  %405 = vmatpush1.msra.mxu0 0.0
  %406 = vmatprep.subr.mxu0 0.0
  %407 = vmatpush1.msra.mxu0 0.0
  %408 = vmatprep.subr.mxu0 0.0
  %409 = vmatpush1.msra.mxu0 0.0
  %410 = vmatprep.subr.mxu0 0.0
  %411 = vmatpush1.msra.mxu0 0.0
  %412 = vmatprep.subr.mxu0 0.0
  %413 = vmatpush1.msra.mxu0 0.0
  %414 = vmatprep.subr.mxu0 0.0
  %415 = vmatpush1.msra.mxu0 0.0
  %416 = vmatprep.subr.mxu0 0.0
  %417 = vmatpush1.msra.mxu0 0.0
  %418 = vmatprep.subr.mxu0 0.0
  %419 = vmatpush1.msra.mxu0 0.0
  %420 = vmatprep.subr.mxu0 0.0
  %421 = vmatpush1.msra.mxu0 0.0
  %422 = vmatprep.subr.mxu0 0.0
  %423 = vmatpush1.msra.mxu0 0.0
  %424 = vmatprep.subr.mxu0 0.0
  %425 = vmatpush1.msra.mxu0 0.0
  %426 = vmatprep.subr.mxu0 0.0
  %427 = vmatpush1.msra.mxu0 0.0
  %428 = vmatprep.subr.mxu0 0.0
  %429 = vmatpush1.msra.mxu0 0.0
  %430 = vmatprep.subr.mxu0 0.0
  %431 = vmatpush1.msra.mxu0 0.0
  %432 = vmatprep.subr.mxu0 0.0
  %433 = vmatpush1.msra.mxu0 0.0
  %434 = vmatprep.subr.mxu0 0.0
  %435 = vmatpush1.msra.mxu0 0.0
  %436 = vmatprep.mubr.f32.mxu0 0.0
  %437 = vmatmul.mubr.f32.gmra.mrb[0].mxu0 %v367
  %v438 = vpop.f32.mrb[0].mxu0
  %v439 = vadd.f32 0.0, %v438
  %v440 = vpop.f32.mrb[0].mxu0
  %441 = vmatprep.mubr.f32.mxu0 0.0
  %442 = vmatmul.mubr.f32.gmra.mrb[0].mxu0 %v370
  %v443 = vpop.f32.mrb[0].mxu0
  %v444 = vadd.f32 0.0, %v443
  %v445 = vpop.f32.mrb[0].mxu0
  %446 = vdwg.mxu0
  %v448 = vlaneseq
  %v449 = vshrl.u32 %v448, 7
  %v450 = vsub.s32 0, %v449
  %v451 = vrot.slane %v41, %v450
  %v453 = vadd.f32 %v451, %v439
  %v454 = vadd.f32 %v451, %v444
  %v455 = vld [vmem:[#allocation3 + $0x4] sm:$0xff]
  %v456 = vld [vmem:[#allocation3 + $0xc] sm:$0xff]
  %s457 = scalar_lea.vmem %s5, 8
  %v458 = vld [vmem:[%s457] sm:$0xff]
  %v460 = vsel %vm36, %v455, 0
  %v463 = vsel %vm36, %v456, 0
  %465 = vmatprep.subr.mxu0 0.0
  %466 = vmatpush1.msra.mxu0 %v458
  %467 = vmatprep.subr.mxu0 0.0
  %468 = vmatpush1.msra.mxu0 0.0
  %469 = vmatprep.subr.mxu0 0.0
  %470 = vmatpush1.msra.mxu0 0.0
  %471 = vmatprep.subr.mxu0 0.0
  %472 = vmatpush1.msra.mxu0 0.0
  %473 = vmatprep.subr.mxu0 0.0
  %474 = vmatpush1.msra.mxu0 0.0
  %475 = vmatprep.subr.mxu0 0.0
  %476 = vmatpush1.msra.mxu0 0.0
  %477 = vmatprep.subr.mxu0 0.0
  %478 = vmatpush1.msra.mxu0 0.0
  %479 = vmatprep.subr.mxu0 0.0
  %480 = vmatpush1.msra.mxu0 0.0
  %481 = vmatprep.subr.mxu0 0.0
  %482 = vmatpush1.msra.mxu0 0.0
  %483 = vmatprep.subr.mxu0 0.0
  %484 = vmatpush1.msra.mxu0 0.0
  %485 = vmatprep.subr.mxu0 0.0
  %486 = vmatpush1.msra.mxu0 0.0
  %487 = vmatprep.subr.mxu0 0.0
  %488 = vmatpush1.msra.mxu0 0.0
  %489 = vmatprep.subr.mxu0 0.0
  %490 = vmatpush1.msra.mxu0 0.0
  %491 = vmatprep.subr.mxu0 0.0
  %492 = vmatpush1.msra.mxu0 0.0
  %493 = vmatprep.subr.mxu0 0.0
  %494 = vmatpush1.msra.mxu0 0.0
  %495 = vmatprep.subr.mxu0 0.0
  %496 = vmatpush1.msra.mxu0 0.0
  %497 = vmatprep.subr.mxu0 0.0
  %498 = vmatpush1.msra.mxu0 0.0
  %499 = vmatprep.subr.mxu0 0.0
  %500 = vmatpush1.msra.mxu0 0.0
  %501 = vmatprep.subr.mxu0 0.0
  %502 = vmatpush1.msra.mxu0 0.0
  %503 = vmatprep.subr.mxu0 0.0
  %504 = vmatpush1.msra.mxu0 0.0
  %505 = vmatprep.subr.mxu0 0.0
  %506 = vmatpush1.msra.mxu0 0.0
  %507 = vmatprep.subr.mxu0 0.0
  %508 = vmatpush1.msra.mxu0 0.0
  %509 = vmatprep.subr.mxu0 0.0
  %510 = vmatpush1.msra.mxu0 0.0
  %511 = vmatprep.subr.mxu0 0.0
  %512 = vmatpush1.msra.mxu0 0.0
  %513 = vmatprep.subr.mxu0 0.0
  %514 = vmatpush1.msra.mxu0 0.0
  %515 = vmatprep.subr.mxu0 0.0
  %516 = vmatpush1.msra.mxu0 0.0
  %517 = vmatprep.subr.mxu0 0.0
  %518 = vmatpush1.msra.mxu0 0.0
  %519 = vmatprep.subr.mxu0 0.0
  %520 = vmatpush1.msra.mxu0 0.0
  %521 = vmatprep.subr.mxu0 0.0
  %522 = vmatpush1.msra.mxu0 0.0
  %523 = vmatprep.subr.mxu0 0.0
  %524 = vmatpush1.msra.mxu0 0.0
  %525 = vmatprep.subr.mxu0 0.0
  %526 = vmatpush1.msra.mxu0 0.0
  %527 = vmatprep.subr.mxu0 0.0
  %528 = vmatpush1.msra.mxu0 0.0
  %529 = vmatprep.mubr.f32.mxu0 0.0
  %530 = vmatmul.mubr.f32.gmra.mrb[0].mxu0 %v460
  %v531 = vpop.f32.mrb[0].mxu0
  %v532 = vadd.f32 0.0, %v531
  %v533 = vpop.f32.mrb[0].mxu0
  %534 = vmatprep.mubr.f32.mxu0 0.0
  %535 = vmatmul.mubr.f32.gmra.mrb[0].mxu0 %v463
  %v536 = vpop.f32.mrb[0].mxu0
  %v537 = vadd.f32 0.0, %v536
  %v538 = vpop.f32.mrb[0].mxu0
  %539 = vdwg.mxu0
  %v540 = vadd.f32 %v453, %v532
  %v541 = vadd.f32 %v454, %v537
  %v542 = vld [vmem:[#allocation3 + $0x8] sm:$0xff]
  %v543 = vld [vmem:[#allocation3 + $0x10] sm:$0xff]
  %s544 = scalar_lea.vmem %s5, 16
  %v545 = vld [vmem:[%s544] sm:$0xff]
  %v547 = vsel %vm36, %v542, 0
  %v550 = vsel %vm36, %v543, 0
  %552 = vmatprep.subr.mxu0 0.0
  %553 = vmatpush1.msra.mxu0 %v545
  %554 = vmatprep.subr.mxu0 0.0
  %555 = vmatpush1.msra.mxu0 0.0
  %556 = vmatprep.subr.mxu0 0.0
  %557 = vmatpush1.msra.mxu0 0.0
  %558 = vmatprep.subr.mxu0 0.0
  %559 = vmatpush1.msra.mxu0 0.0
  %560 = vmatprep.subr.mxu0 0.0
  %561 = vmatpush1.msra.mxu0 0.0
  %562 = vmatprep.subr.mxu0 0.0
  %563 = vmatpush1.msra.mxu0 0.0
  %564 = vmatprep.subr.mxu0 0.0
  %565 = vmatpush1.msra.mxu0 0.0
  %566 = vmatprep.subr.mxu0 0.0
  %567 = vmatpush1.msra.mxu0 0.0
  %568 = vmatprep.subr.mxu0 0.0
  %569 = vmatpush1.msra.mxu0 0.0
  %570 = vmatprep.subr.mxu0 0.0
  %571 = vmatpush1.msra.mxu0 0.0
  %572 = vmatprep.subr.mxu0 0.0
  %573 = vmatpush1.msra.mxu0 0.0
  %574 = vmatprep.subr.mxu0 0.0
  %575 = vmatpush1.msra.mxu0 0.0
  %576 = vmatprep.subr.mxu0 0.0
  %577 = vmatpush1.msra.mxu0 0.0
  %578 = vmatprep.subr.mxu0 0.0
  %579 = vmatpush1.msra.mxu0 0.0
  %580 = vmatprep.subr.mxu0 0.0
  %581 = vmatpush1.msra.mxu0 0.0
  %582 = vmatprep.subr.mxu0 0.0
  %583 = vmatpush1.msra.mxu0 0.0
  %584 = vmatprep.subr.mxu0 0.0
  %585 = vmatpush1.msra.mxu0 0.0
  %586 = vmatprep.subr.mxu0 0.0
  %587 = vmatpush1.msra.mxu0 0.0
  %588 = vmatprep.subr.mxu0 0.0
  %589 = vmatpush1.msra.mxu0 0.0
  %590 = vmatprep.subr.mxu0 0.0
  %591 = vmatpush1.msra.mxu0 0.0
  %592 = vmatprep.subr.mxu0 0.0
  %593 = vmatpush1.msra.mxu0 0.0
  %594 = vmatprep.subr.mxu0 0.0
  %595 = vmatpush1.msra.mxu0 0.0
  %596 = vmatprep.subr.mxu0 0.0
  %597 = vmatpush1.msra.mxu0 0.0
  %598 = vmatprep.subr.mxu0 0.0
  %599 = vmatpush1.msra.mxu0 0.0
  %600 = vmatprep.subr.mxu0 0.0
  %601 = vmatpush1.msra.mxu0 0.0
  %602 = vmatprep.subr.mxu0 0.0
  %603 = vmatpush1.msra.mxu0 0.0
  %604 = vmatprep.subr.mxu0 0.0
  %605 = vmatpush1.msra.mxu0 0.0
  %606 = vmatprep.subr.mxu0 0.0
  %607 = vmatpush1.msra.mxu0 0.0
  %608 = vmatprep.subr.mxu0 0.0
  %609 = vmatpush1.msra.mxu0 0.0
  %610 = vmatprep.subr.mxu0 0.0
  %611 = vmatpush1.msra.mxu0 0.0
  %612 = vmatprep.subr.mxu0 0.0
  %613 = vmatpush1.msra.mxu0 0.0
  %614 = vmatprep.subr.mxu0 0.0
  %615 = vmatpush1.msra.mxu0 0.0
  %616 = vmatprep.mubr.f32.mxu0 0.0
  %617 = vmatmul.mubr.f32.gmra.mrb[0].mxu0 %v547
  %v618 = vpop.f32.mrb[0].mxu0
  %v619 = vadd.f32 0.0, %v618
  %v620 = vpop.f32.mrb[0].mxu0
  %621 = vmatprep.mubr.f32.mxu0 0.0
  %622 = vmatmul.mubr.f32.gmra.mrb[0].mxu0 %v550
  %v623 = vpop.f32.mrb[0].mxu0
  %v624 = vadd.f32 0.0, %v623
  %v625 = vpop.f32.mrb[0].mxu0
  %626 = vdwg.mxu0
  %v627 = vadd.f32 %v540, %v619
  %v628 = vadd.f32 %v541, %v624
  %v629 = vsel %vm36, %v627, 0.0
  %630 = vadd.xlane.f32.xlu0 %v629
  %v631 = vpop.xlane.xlu0 %630
  %v632 = vsel %vm36, %v628, 0.0
  %633 = vadd.xlane.f32.xlu0 %v632
  %v634 = vpop.xlane.xlu0 %633
  %v635 = vmul.f32 %v631, %v320
  %v636 = vmul.f32 %v634, %v320
  %v637 = vsub.f32 %v627, %v635
  %v638 = vsub.f32 %v628, %v636
  %v639 = vmul.f32 %v637, %v637
  %v640 = vmul.f32 %v638, %v638
  %v641 = vsel %vm36, %v639, 0.0
  %642 = vadd.xlane.f32.xlu0 %v641
  %v643 = vpop.xlane.xlu0 %642
  %v644 = vsel %vm36, %v640, 0.0
  %645 = vadd.xlane.f32.xlu0 %v644
  %v646 = vpop.xlane.xlu0 %645
  %v647 = vmul.f32 %v643, %v320
  %v648 = vmul.f32 %v646, %v320
  %v649 = vadd.f32 %v647, 1e-08
  %v650 = vadd.f32 %v648, 1e-08
  %v651 = vrsqrt.pop %v649
  %v652 = vrsqrt.pop %v650
  %v653 = vmul.f32 %v637, %v651
  %v654 = vmul.f32 %v638, %v652
  %v656 = vlaneseq
  %v657 = vshrl.u32 %v656, 7
  %v658 = vsub.s32 0, %v657
  %v659 = vrot.slane %v42, %v658
  %v661 = vmul.f32 %v653, %v659
  %v662 = vmul.f32 %v654, %v659
  %v664 = vlaneseq
  %v665 = vshrl.u32 %v664, 7
  %v666 = vsub.s32 0, %v665
  %v667 = vrot.slane %v43, %v666
  %v669 = vadd.f32 %v661, %v667
  %v670 = vadd.f32 %v662, %v667
  %v671 = vmax.f32 %v669, 0.0
  %v672 = vmax.f32 %v670, 0.0
  %v673 = vadd.f32 %v671, %v44
  %v674 = vadd.f32 %v672, %v45
  %675 = vst.msk [vmem:[%s10] sm:$0xff] %vm36, %v673
  %676 = vst.msk [vmem:[%s10 + $0x8] sm:$0xff] %vm36, %v674
  %s677 = scalar_lea.vmem %s0, 16
  %v678 = vld [vmem:[%s677] sm:$0xff]
  %v679 = vld [vmem:[%s677 + $0x8] sm:$0xff]
  %680 = vst.msk [vmem:[#allocation2 + $0x4] sm:$0xff] %vm36, %v678
  %681 = vst.msk [vmem:[#allocation2 + $0xc] sm:$0xff] %vm36, %v679
  %v682 = vld [vmem:[#allocation2] sm:$0xff]
  %v683 = vld [vmem:[#allocation2 + $0x8] sm:$0xff]
  %v684 = vld [vmem:[%s1] sm:$0xff]
  %v686 = vsel %vm36, %v682, 0
  %v689 = vsel %vm36, %v683, 0
  %691 = vmatprep.subr.mxu0 0.0
  %692 = vmatpush1.msra.mxu0 %v684
  %693 = vmatprep.subr.mxu0 0.0
  %694 = vmatpush1.msra.mxu0 0.0
  %695 = vmatprep.subr.mxu0 0.0
  %696 = vmatpush1.msra.mxu0 0.0
  %697 = vmatprep.subr.mxu0 0.0
  %698 = vmatpush1.msra.mxu0 0.0
  %699 = vmatprep.subr.mxu0 0.0
  %700 = vmatpush1.msra.mxu0 0.0
  %701 = vmatprep.subr.mxu0 0.0
  %702 = vmatpush1.msra.mxu0 0.0
  %703 = vmatprep.subr.mxu0 0.0
  %704 = vmatpush1.msra.mxu0 0.0
  %705 = vmatprep.subr.mxu0 0.0
  %706 = vmatpush1.msra.mxu0 0.0
  %707 = vmatprep.subr.mxu0 0.0
  %708 = vmatpush1.msra.mxu0 0.0
  %709 = vmatprep.subr.mxu0 0.0
  %710 = vmatpush1.msra.mxu0 0.0
  %711 = vmatprep.subr.mxu0 0.0
  %712 = vmatpush1.msra.mxu0 0.0
  %713 = vmatprep.subr.mxu0 0.0
  %714 = vmatpush1.msra.mxu0 0.0
  %715 = vmatprep.subr.mxu0 0.0
  %716 = vmatpush1.msra.mxu0 0.0
  %717 = vmatprep.subr.mxu0 0.0
  %718 = vmatpush1.msra.mxu0 0.0
  %719 = vmatprep.subr.mxu0 0.0
  %720 = vmatpush1.msra.mxu0 0.0
  %721 = vmatprep.subr.mxu0 0.0
  %722 = vmatpush1.msra.mxu0 0.0
  %723 = vmatprep.subr.mxu0 0.0
  %724 = vmatpush1.msra.mxu0 0.0
  %725 = vmatprep.subr.mxu0 0.0
  %726 = vmatpush1.msra.mxu0 0.0
  %727 = vmatprep.subr.mxu0 0.0
  %728 = vmatpush1.msra.mxu0 0.0
  %729 = vmatprep.subr.mxu0 0.0
  %730 = vmatpush1.msra.mxu0 0.0
  %731 = vmatprep.subr.mxu0 0.0
  %732 = vmatpush1.msra.mxu0 0.0
  %733 = vmatprep.subr.mxu0 0.0
  %734 = vmatpush1.msra.mxu0 0.0
  %735 = vmatprep.subr.mxu0 0.0
  %736 = vmatpush1.msra.mxu0 0.0
  %737 = vmatprep.subr.mxu0 0.0
  %738 = vmatpush1.msra.mxu0 0.0
  %739 = vmatprep.subr.mxu0 0.0
  %740 = vmatpush1.msra.mxu0 0.0
  %741 = vmatprep.subr.mxu0 0.0
  %742 = vmatpush1.msra.mxu0 0.0
  %743 = vmatprep.subr.mxu0 0.0
  %744 = vmatpush1.msra.mxu0 0.0
  %745 = vmatprep.subr.mxu0 0.0
  %746 = vmatpush1.msra.mxu0 0.0
  %747 = vmatprep.subr.mxu0 0.0
  %748 = vmatpush1.msra.mxu0 0.0
  %749 = vmatprep.subr.mxu0 0.0
  %750 = vmatpush1.msra.mxu0 0.0
  %751 = vmatprep.subr.mxu0 0.0
  %752 = vmatpush1.msra.mxu0 0.0
  %753 = vmatprep.subr.mxu0 0.0
  %754 = vmatpush1.msra.mxu0 0.0
  %755 = vmatprep.mubr.f32.mxu0 0.0
  %756 = vmatmul.mubr.f32.gmra.mrb[0].mxu0 %v686
  %v757 = vpop.f32.mrb[0].mxu0
  %v758 = vadd.f32 0.0, %v757
  %v759 = vpop.f32.mrb[0].mxu0
  %760 = vmatprep.mubr.f32.mxu0 0.0
  %761 = vmatmul.mubr.f32.gmra.mrb[0].mxu0 %v689
  %v762 = vpop.f32.mrb[0].mxu0
  %v763 = vadd.f32 0.0, %v762
  %v764 = vpop.f32.mrb[0].mxu0
  %765 = vdwg.mxu0
  %v766 = vadd.f32 %v136, %v758
  %v767 = vadd.f32 %v136, %v763
  %v768 = vld [vmem:[#allocation2 + $0x2] sm:$0xff]
  %v769 = vld [vmem:[#allocation2 + $0xa] sm:$0xff]
  %v770 = vld [vmem:[%s142] sm:$0xff]
  %v772 = vsel %vm36, %v768, 0
  %v775 = vsel %vm36, %v769, 0
  %777 = vmatprep.subr.mxu0 0.0
  %778 = vmatpush1.msra.mxu0 %v770
  %779 = vmatprep.subr.mxu0 0.0
  %780 = vmatpush1.msra.mxu0 0.0
  %781 = vmatprep.subr.mxu0 0.0
  %782 = vmatpush1.msra.mxu0 0.0
  %783 = vmatprep.subr.mxu0 0.0
  %784 = vmatpush1.msra.mxu0 0.0
  %785 = vmatprep.subr.mxu0 0.0
  %786 = vmatpush1.msra.mxu0 0.0
  %787 = vmatprep.subr.mxu0 0.0
  %788 = vmatpush1.msra.mxu0 0.0
  %789 = vmatprep.subr.mxu0 0.0
  %790 = vmatpush1.msra.mxu0 0.0
  %791 = vmatprep.subr.mxu0 0.0
  %792 = vmatpush1.msra.mxu0 0.0
  %793 = vmatprep.subr.mxu0 0.0
  %794 = vmatpush1.msra.mxu0 0.0
  %795 = vmatprep.subr.mxu0 0.0
  %796 = vmatpush1.msra.mxu0 0.0
  %797 = vmatprep.subr.mxu0 0.0
  %798 = vmatpush1.msra.mxu0 0.0
  %799 = vmatprep.subr.mxu0 0.0
  %800 = vmatpush1.msra.mxu0 0.0
  %801 = vmatprep.subr.mxu0 0.0
  %802 = vmatpush1.msra.mxu0 0.0
  %803 = vmatprep.subr.mxu0 0.0
  %804 = vmatpush1.msra.mxu0 0.0
  %805 = vmatprep.subr.mxu0 0.0
  %806 = vmatpush1.msra.mxu0 0.0
  %807 = vmatprep.subr.mxu0 0.0
  %808 = vmatpush1.msra.mxu0 0.0
  %809 = vmatprep.subr.mxu0 0.0
  %810 = vmatpush1.msra.mxu0 0.0
  %811 = vmatprep.subr.mxu0 0.0
  %812 = vmatpush1.msra.mxu0 0.0
  %813 = vmatprep.subr.mxu0 0.0
  %814 = vmatpush1.msra.mxu0 0.0
  %815 = vmatprep.subr.mxu0 0.0
  %816 = vmatpush1.msra.mxu0 0.0
  %817 = vmatprep.subr.mxu0 0.0
  %818 = vmatpush1.msra.mxu0 0.0
  %819 = vmatprep.subr.mxu0 0.0
  %820 = vmatpush1.msra.mxu0 0.0
  %821 = vmatprep.subr.mxu0 0.0
  %822 = vmatpush1.msra.mxu0 0.0
  %823 = vmatprep.subr.mxu0 0.0
  %824 = vmatpush1.msra.mxu0 0.0
  %825 = vmatprep.subr.mxu0 0.0
  %826 = vmatpush1.msra.mxu0 0.0
  %827 = vmatprep.subr.mxu0 0.0
  %828 = vmatpush1.msra.mxu0 0.0
  %829 = vmatprep.subr.mxu0 0.0
  %830 = vmatpush1.msra.mxu0 0.0
  %831 = vmatprep.subr.mxu0 0.0
  %832 = vmatpush1.msra.mxu0 0.0
  %833 = vmatprep.subr.mxu0 0.0
  %834 = vmatpush1.msra.mxu0 0.0
  %835 = vmatprep.subr.mxu0 0.0
  %836 = vmatpush1.msra.mxu0 0.0
  %837 = vmatprep.subr.mxu0 0.0
  %838 = vmatpush1.msra.mxu0 0.0
  %839 = vmatprep.subr.mxu0 0.0
  %840 = vmatpush1.msra.mxu0 0.0
  %841 = vmatprep.mubr.f32.mxu0 0.0
  %842 = vmatmul.mubr.f32.gmra.mrb[0].mxu0 %v772
  %v843 = vpop.f32.mrb[0].mxu0
  %v844 = vadd.f32 0.0, %v843
  %v845 = vpop.f32.mrb[0].mxu0
  %846 = vmatprep.mubr.f32.mxu0 0.0
  %847 = vmatmul.mubr.f32.gmra.mrb[0].mxu0 %v775
  %v848 = vpop.f32.mrb[0].mxu0
  %v849 = vadd.f32 0.0, %v848
  %v850 = vpop.f32.mrb[0].mxu0
  %851 = vdwg.mxu0
  %v852 = vadd.f32 %v766, %v844
  %v853 = vadd.f32 %v767, %v849
  %v854 = vld [vmem:[#allocation2 + $0x4] sm:$0xff]
  %v855 = vld [vmem:[#allocation2 + $0xc] sm:$0xff]
  %v856 = vld [vmem:[%s229] sm:$0xff]
  %v858 = vsel %vm36, %v854, 0
  %v861 = vsel %vm36, %v855, 0
  %863 = vmatprep.subr.mxu0 0.0
  %864 = vmatpush1.msra.mxu0 %v856
  %865 = vmatprep.subr.mxu0 0.0
  %866 = vmatpush1.msra.mxu0 0.0
  %867 = vmatprep.subr.mxu0 0.0
  %868 = vmatpush1.msra.mxu0 0.0
  %869 = vmatprep.subr.mxu0 0.0
  %870 = vmatpush1.msra.mxu0 0.0
  %871 = vmatprep.subr.mxu0 0.0
  %872 = vmatpush1.msra.mxu0 0.0
  %873 = vmatprep.subr.mxu0 0.0
  %874 = vmatpush1.msra.mxu0 0.0
  %875 = vmatprep.subr.mxu0 0.0
  %876 = vmatpush1.msra.mxu0 0.0
  %877 = vmatprep.subr.mxu0 0.0
  %878 = vmatpush1.msra.mxu0 0.0
  %879 = vmatprep.subr.mxu0 0.0
  %880 = vmatpush1.msra.mxu0 0.0
  %881 = vmatprep.subr.mxu0 0.0
  %882 = vmatpush1.msra.mxu0 0.0
  %883 = vmatprep.subr.mxu0 0.0
  %884 = vmatpush1.msra.mxu0 0.0
  %885 = vmatprep.subr.mxu0 0.0
  %886 = vmatpush1.msra.mxu0 0.0
  %887 = vmatprep.subr.mxu0 0.0
  %888 = vmatpush1.msra.mxu0 0.0
  %889 = vmatprep.subr.mxu0 0.0
  %890 = vmatpush1.msra.mxu0 0.0
  %891 = vmatprep.subr.mxu0 0.0
  %892 = vmatpush1.msra.mxu0 0.0
  %893 = vmatprep.subr.mxu0 0.0
  %894 = vmatpush1.msra.mxu0 0.0
  %895 = vmatprep.subr.mxu0 0.0
  %896 = vmatpush1.msra.mxu0 0.0
  %897 = vmatprep.subr.mxu0 0.0
  %898 = vmatpush1.msra.mxu0 0.0
  %899 = vmatprep.subr.mxu0 0.0
  %900 = vmatpush1.msra.mxu0 0.0
  %901 = vmatprep.subr.mxu0 0.0
  %902 = vmatpush1.msra.mxu0 0.0
  %903 = vmatprep.subr.mxu0 0.0
  %904 = vmatpush1.msra.mxu0 0.0
  %905 = vmatprep.subr.mxu0 0.0
  %906 = vmatpush1.msra.mxu0 0.0
  %907 = vmatprep.subr.mxu0 0.0
  %908 = vmatpush1.msra.mxu0 0.0
  %909 = vmatprep.subr.mxu0 0.0
  %910 = vmatpush1.msra.mxu0 0.0
  %911 = vmatprep.subr.mxu0 0.0
  %912 = vmatpush1.msra.mxu0 0.0
  %913 = vmatprep.subr.mxu0 0.0
  %914 = vmatpush1.msra.mxu0 0.0
  %915 = vmatprep.subr.mxu0 0.0
  %916 = vmatpush1.msra.mxu0 0.0
  %917 = vmatprep.subr.mxu0 0.0
  %918 = vmatpush1.msra.mxu0 0.0
  %919 = vmatprep.subr.mxu0 0.0
  %920 = vmatpush1.msra.mxu0 0.0
  %921 = vmatprep.subr.mxu0 0.0
  %922 = vmatpush1.msra.mxu0 0.0
  %923 = vmatprep.subr.mxu0 0.0
  %924 = vmatpush1.msra.mxu0 0.0
  %925 = vmatprep.subr.mxu0 0.0
  %926 = vmatpush1.msra.mxu0 0.0
  %927 = vmatprep.mubr.f32.mxu0 0.0
  %928 = vmatmul.mubr.f32.gmra.mrb[0].mxu0 %v858
  %v929 = vpop.f32.mrb[0].mxu0
  %v930 = vadd.f32 0.0, %v929
  %v931 = vpop.f32.mrb[0].mxu0
  %932 = vmatprep.mubr.f32.mxu0 0.0
  %933 = vmatmul.mubr.f32.gmra.mrb[0].mxu0 %v861
  %v934 = vpop.f32.mrb[0].mxu0
  %v935 = vadd.f32 0.0, %v934
  %v936 = vpop.f32.mrb[0].mxu0
  %937 = vdwg.mxu0
  %v938 = vadd.f32 %v852, %v930
  %v939 = vadd.f32 %v853, %v935
  %v940 = vsel %vm36, %v938, 0.0
  %941 = vadd.xlane.f32.xlu0 %v940
  %v942 = vpop.xlane.xlu0 %941
  %v943 = vsel %vm36, %v939, 0.0
  %944 = vadd.xlane.f32.xlu0 %v943
  %v945 = vpop.xlane.xlu0 %944
  %v946 = vmul.f32 %v942, %v320
  %v947 = vmul.f32 %v945, %v320
  %v948 = vsub.f32 %v938, %v946
  %v949 = vsub.f32 %v939, %v947
  %v950 = vmul.f32 %v948, %v948
  %v951 = vmul.f32 %v949, %v949
  %v952 = vsel %vm36, %v950, 0.0
  %953 = vadd.xlane.f32.xlu0 %v952
  %v954 = vpop.xlane.xlu0 %953
  %v955 = vsel %vm36, %v951, 0.0
  %956 = vadd.xlane.f32.xlu0 %v955
  %v957 = vpop.xlane.xlu0 %956
  %v958 = vmul.f32 %v954, %v320
  %v959 = vmul.f32 %v957, %v320
  %v960 = vadd.f32 %v958, 1e-08
  %v961 = vadd.f32 %v959, 1e-08
  %v962 = vrsqrt.pop %v960
  %v963 = vrsqrt.pop %v961
  %v964 = vmul.f32 %v948, %v962
  %v965 = vmul.f32 %v949, %v963
  %v966 = vmul.f32 %v964, %v345
  %v967 = vmul.f32 %v965, %v345
  %v968 = vadd.f32 %v966, %v353
  %v969 = vadd.f32 %v967, %v353
  %v970 = vmax.f32 %v968, 0.0
  %v971 = vmax.f32 %v969, 0.0
  %s972 = scalar_lea.vmem %s9, 16
  %973 = vst.msk [vmem:[%s972] sm:$0xff] %vm36, %v970
  %974 = vst.msk [vmem:[%s972 + $0x8] sm:$0xff] %vm36, %v971
  %975 = vst.msk [vmem:[#allocation3 + $0x8] sm:$0xff] %vm36, %v970
  %976 = vst.msk [vmem:[#allocation3 + $0x10] sm:$0xff] %vm36, %v971
  %v977 = vld [vmem:[#allocation3] sm:$0xff]
  %v978 = vld [vmem:[#allocation3 + $0x8] sm:$0xff]
  %v979 = vld [vmem:[%s5] sm:$0xff]
  %v981 = vsel %vm36, %v977, 0
  %v984 = vsel %vm36, %v978, 0
  %986 = vmatprep.subr.mxu0 0.0
  %987 = vmatpush1.msra.mxu0 %v979
  %988 = vmatprep.subr.mxu0 0.0
  %989 = vmatpush1.msra.mxu0 0.0
  %990 = vmatprep.subr.mxu0 0.0
  %991 = vmatpush1.msra.mxu0 0.0
  %992 = vmatprep.subr.mxu0 0.0
  %993 = vmatpush1.msra.mxu0 0.0
  %994 = vmatprep.subr.mxu0 0.0
  %995 = vmatpush1.msra.mxu0 0.0
  %996 = vmatprep.subr.mxu0 0.0
  %997 = vmatpush1.msra.mxu0 0.0
  %998 = vmatprep.subr.mxu0 0.0
  %999 = vmatpush1.msra.mxu0 0.0
  %1000 = vmatprep.subr.mxu0 0.0
  %1001 = vmatpush1.msra.mxu0 0.0
  %1002 = vmatprep.subr.mxu0 0.0
  %1003 = vmatpush1.msra.mxu0 0.0
  %1004 = vmatprep.subr.mxu0 0.0
  %1005 = vmatpush1.msra.mxu0 0.0
  %1006 = vmatprep.subr.mxu0 0.0
  %1007 = vmatpush1.msra.mxu0 0.0
  %1008 = vmatprep.subr.mxu0 0.0
  %1009 = vmatpush1.msra.mxu0 0.0
  %1010 = vmatprep.subr.mxu0 0.0
  %1011 = vmatpush1.msra.mxu0 0.0
  %1012 = vmatprep.subr.mxu0 0.0
  %1013 = vmatpush1.msra.mxu0 0.0
  %1014 = vmatprep.subr.mxu0 0.0
  %1015 = vmatpush1.msra.mxu0 0.0
  %1016 = vmatprep.subr.mxu0 0.0
  %1017 = vmatpush1.msra.mxu0 0.0
  %1018 = vmatprep.subr.mxu0 0.0
  %1019 = vmatpush1.msra.mxu0 0.0
  %1020 = vmatprep.subr.mxu0 0.0
  %1021 = vmatpush1.msra.mxu0 0.0
  %1022 = vmatprep.subr.mxu0 0.0
  %1023 = vmatpush1.msra.mxu0 0.0
  %1024 = vmatprep.subr.mxu0 0.0
  %1025 = vmatpush1.msra.mxu0 0.0
  %1026 = vmatprep.subr.mxu0 0.0
  %1027 = vmatpush1.msra.mxu0 0.0
  %1028 = vmatprep.subr.mxu0 0.0
  %1029 = vmatpush1.msra.mxu0 0.0
  %1030 = vmatprep.subr.mxu0 0.0
  %1031 = vmatpush1.msra.mxu0 0.0
  %1032 = vmatprep.subr.mxu0 0.0
  %1033 = vmatpush1.msra.mxu0 0.0
  %1034 = vmatprep.subr.mxu0 0.0
  %1035 = vmatpush1.msra.mxu0 0.0
  %1036 = vmatprep.subr.mxu0 0.0
  %1037 = vmatpush1.msra.mxu0 0.0
  %1038 = vmatprep.subr.mxu0 0.0
  %1039 = vmatpush1.msra.mxu0 0.0
  %1040 = vmatprep.subr.mxu0 0.0
  %1041 = vmatpush1.msra.mxu0 0.0
  %1042 = vmatprep.subr.mxu0 0.0
  %1043 = vmatpush1.msra.mxu0 0.0
  %1044 = vmatprep.subr.mxu0 0.0
  %1045 = vmatpush1.msra.mxu0 0.0
  %1046 = vmatprep.subr.mxu0 0.0
  %1047 = vmatpush1.msra.mxu0 0.0
  %1048 = vmatprep.subr.mxu0 0.0
  %1049 = vmatpush1.msra.mxu0 0.0
  %1050 = vmatprep.mubr.f32.mxu0 0.0
  %1051 = vmatmul.mubr.f32.gmra.mrb[0].mxu0 %v981
  %v1052 = vpop.f32.mrb[0].mxu0
  %v1053 = vadd.f32 0.0, %v1052
  %v1054 = vpop.f32.mrb[0].mxu0
  %1055 = vmatprep.mubr.f32.mxu0 0.0
  %1056 = vmatmul.mubr.f32.gmra.mrb[0].mxu0 %v984
  %v1057 = vpop.f32.mrb[0].mxu0
  %v1058 = vadd.f32 0.0, %v1057
  %v1059 = vpop.f32.mrb[0].mxu0
  %1060 = vdwg.mxu0
  %v1061 = vadd.f32 %v451, %v1053
  %v1062 = vadd.f32 %v451, %v1058
  %v1063 = vld [vmem:[#allocation3 + $0x4] sm:$0xff]
  %v1064 = vld [vmem:[#allocation3 + $0xc] sm:$0xff]
  %v1065 = vld [vmem:[%s457] sm:$0xff]
  %v1067 = vsel %vm36, %v1063, 0
  %v1070 = vsel %vm36, %v1064, 0
  %1072 = vmatprep.subr.mxu0 0.0
  %1073 = vmatpush1.msra.mxu0 %v1065
  %1074 = vmatprep.subr.mxu0 0.0
  %1075 = vmatpush1.msra.mxu0 0.0
  %1076 = vmatprep.subr.mxu0 0.0
  %1077 = vmatpush1.msra.mxu0 0.0
  %1078 = vmatprep.subr.mxu0 0.0
  %1079 = vmatpush1.msra.mxu0 0.0
  %1080 = vmatprep.subr.mxu0 0.0
  %1081 = vmatpush1.msra.mxu0 0.0
  %1082 = vmatprep.subr.mxu0 0.0
  %1083 = vmatpush1.msra.mxu0 0.0
  %1084 = vmatprep.subr.mxu0 0.0
  %1085 = vmatpush1.msra.mxu0 0.0
  %1086 = vmatprep.subr.mxu0 0.0
  %1087 = vmatpush1.msra.mxu0 0.0
  %1088 = vmatprep.subr.mxu0 0.0
  %1089 = vmatpush1.msra.mxu0 0.0
  %1090 = vmatprep.subr.mxu0 0.0
  %1091 = vmatpush1.msra.mxu0 0.0
  %1092 = vmatprep.subr.mxu0 0.0
  %1093 = vmatpush1.msra.mxu0 0.0
  %1094 = vmatprep.subr.mxu0 0.0
  %1095 = vmatpush1.msra.mxu0 0.0
  %1096 = vmatprep.subr.mxu0 0.0
  %1097 = vmatpush1.msra.mxu0 0.0
  %1098 = vmatprep.subr.mxu0 0.0
  %1099 = vmatpush1.msra.mxu0 0.0
  %1100 = vmatprep.subr.mxu0 0.0
  %1101 = vmatpush1.msra.mxu0 0.0
  %1102 = vmatprep.subr.mxu0 0.0
  %1103 = vmatpush1.msra.mxu0 0.0
  %1104 = vmatprep.subr.mxu0 0.0
  %1105 = vmatpush1.msra.mxu0 0.0
  %1106 = vmatprep.subr.mxu0 0.0
  %1107 = vmatpush1.msra.mxu0 0.0
  %1108 = vmatprep.subr.mxu0 0.0
  %1109 = vmatpush1.msra.mxu0 0.0
  %1110 = vmatprep.subr.mxu0 0.0
  %1111 = vmatpush1.msra.mxu0 0.0
  %1112 = vmatprep.subr.mxu0 0.0
  %1113 = vmatpush1.msra.mxu0 0.0
  %1114 = vmatprep.subr.mxu0 0.0
  %1115 = vmatpush1.msra.mxu0 0.0
  %1116 = vmatprep.subr.mxu0 0.0
  %1117 = vmatpush1.msra.mxu0 0.0
  %1118 = vmatprep.subr.mxu0 0.0
  %1119 = vmatpush1.msra.mxu0 0.0
  %1120 = vmatprep.subr.mxu0 0.0
  %1121 = vmatpush1.msra.mxu0 0.0
  %1122 = vmatprep.subr.mxu0 0.0
  %1123 = vmatpush1.msra.mxu0 0.0
  %1124 = vmatprep.subr.mxu0 0.0
  %1125 = vmatpush1.msra.mxu0 0.0
  %1126 = vmatprep.subr.mxu0 0.0
  %1127 = vmatpush1.msra.mxu0 0.0
  %1128 = vmatprep.subr.mxu0 0.0
  %1129 = vmatpush1.msra.mxu0 0.0
  %1130 = vmatprep.subr.mxu0 0.0
  %1131 = vmatpush1.msra.mxu0 0.0
  %1132 = vmatprep.subr.mxu0 0.0
  %1133 = vmatpush1.msra.mxu0 0.0
  %1134 = vmatprep.subr.mxu0 0.0
  %1135 = vmatpush1.msra.mxu0 0.0
  %1136 = vmatprep.mubr.f32.mxu0 0.0
  %1137 = vmatmul.mubr.f32.gmra.mrb[0].mxu0 %v1067
  %v1138 = vpop.f32.mrb[0].mxu0
  %v1139 = vadd.f32 0.0, %v1138
  %v1140 = vpop.f32.mrb[0].mxu0
  %1141 = vmatprep.mubr.f32.mxu0 0.0
  %1142 = vmatmul.mubr.f32.gmra.mrb[0].mxu0 %v1070
  %v1143 = vpop.f32.mrb[0].mxu0
  %v1144 = vadd.f32 0.0, %v1143
  %v1145 = vpop.f32.mrb[0].mxu0
  %1146 = vdwg.mxu0
  %v1147 = vadd.f32 %v1061, %v1139
  %v1148 = vadd.f32 %v1062, %v1144
  %v1149 = vld [vmem:[#allocation3 + $0x8] sm:$0xff]
  %v1150 = vld [vmem:[#allocation3 + $0x10] sm:$0xff]
  %v1151 = vld [vmem:[%s544] sm:$0xff]
  %v1153 = vsel %vm36, %v1149, 0
  %v1156 = vsel %vm36, %v1150, 0
  %1158 = vmatprep.subr.mxu0 0.0
  %1159 = vmatpush1.msra.mxu0 %v1151
  %1160 = vmatprep.subr.mxu0 0.0
  %1161 = vmatpush1.msra.mxu0 0.0
  %1162 = vmatprep.subr.mxu0 0.0
  %1163 = vmatpush1.msra.mxu0 0.0
  %1164 = vmatprep.subr.mxu0 0.0
  %1165 = vmatpush1.msra.mxu0 0.0
  %1166 = vmatprep.subr.mxu0 0.0
  %1167 = vmatpush1.msra.mxu0 0.0
  %1168 = vmatprep.subr.mxu0 0.0
  %1169 = vmatpush1.msra.mxu0 0.0
  %1170 = vmatprep.subr.mxu0 0.0
  %1171 = vmatpush1.msra.mxu0 0.0
  %1172 = vmatprep.subr.mxu0 0.0
  %1173 = vmatpush1.msra.mxu0 0.0
  %1174 = vmatprep.subr.mxu0 0.0
  %1175 = vmatpush1.msra.mxu0 0.0
  %1176 = vmatprep.subr.mxu0 0.0
  %1177 = vmatpush1.msra.mxu0 0.0
  %1178 = vmatprep.subr.mxu0 0.0
  %1179 = vmatpush1.msra.mxu0 0.0
  %1180 = vmatprep.subr.mxu0 0.0
  %1181 = vmatpush1.msra.mxu0 0.0
  %1182 = vmatprep.subr.mxu0 0.0
  %1183 = vmatpush1.msra.mxu0 0.0
  %1184 = vmatprep.subr.mxu0 0.0
  %1185 = vmatpush1.msra.mxu0 0.0
  %1186 = vmatprep.subr.mxu0 0.0
  %1187 = vmatpush1.msra.mxu0 0.0
  %1188 = vmatprep.subr.mxu0 0.0
  %1189 = vmatpush1.msra.mxu0 0.0
  %1190 = vmatprep.subr.mxu0 0.0
  %1191 = vmatpush1.msra.mxu0 0.0
  %1192 = vmatprep.subr.mxu0 0.0
  %1193 = vmatpush1.msra.mxu0 0.0
  %1194 = vmatprep.subr.mxu0 0.0
  %1195 = vmatpush1.msra.mxu0 0.0
  %1196 = vmatprep.subr.mxu0 0.0
  %1197 = vmatpush1.msra.mxu0 0.0
  %1198 = vmatprep.subr.mxu0 0.0
  %1199 = vmatpush1.msra.mxu0 0.0
  %1200 = vmatprep.subr.mxu0 0.0
  %1201 = vmatpush1.msra.mxu0 0.0
  %1202 = vmatprep.subr.mxu0 0.0
  %1203 = vmatpush1.msra.mxu0 0.0
  %1204 = vmatprep.subr.mxu0 0.0
  %1205 = vmatpush1.msra.mxu0 0.0
  %1206 = vmatprep.subr.mxu0 0.0
  %1207 = vmatpush1.msra.mxu0 0.0
  %1208 = vmatprep.subr.mxu0 0.0
  %1209 = vmatpush1.msra.mxu0 0.0
  %1210 = vmatprep.subr.mxu0 0.0
  %1211 = vmatpush1.msra.mxu0 0.0
  %1212 = vmatprep.subr.mxu0 0.0
  %1213 = vmatpush1.msra.mxu0 0.0
  %1214 = vmatprep.subr.mxu0 0.0
  %1215 = vmatpush1.msra.mxu0 0.0
  %1216 = vmatprep.subr.mxu0 0.0
  %1217 = vmatpush1.msra.mxu0 0.0
  %1218 = vmatprep.subr.mxu0 0.0
  %1219 = vmatpush1.msra.mxu0 0.0
  %1220 = vmatprep.subr.mxu0 0.0
  %1221 = vmatpush1.msra.mxu0 0.0
  %1222 = vmatprep.mubr.f32.mxu0 0.0
  %1223 = vmatmul.mubr.f32.gmra.mrb[0].mxu0 %v1153
  %v1224 = vpop.f32.mrb[0].mxu0
  %v1225 = vadd.f32 0.0, %v1224
  %v1226 = vpop.f32.mrb[0].mxu0
  %1227 = vmatprep.mubr.f32.mxu0 0.0
  %1228 = vmatmul.mubr.f32.gmra.mrb[0].mxu0 %v1156
  %v1229 = vpop.f32.mrb[0].mxu0
  %v1230 = vadd.f32 0.0, %v1229
  %v1231 = vpop.f32.mrb[0].mxu0
  %1232 = vdwg.mxu0
  %v1233 = vadd.f32 %v1147, %v1225
  %v1234 = vadd.f32 %v1148, %v1230
  %v1235 = vsel %vm36, %v1233, 0.0
  %1236 = vadd.xlane.f32.xlu0 %v1235
  %v1237 = vpop.xlane.xlu0 %1236
  %v1238 = vsel %vm36, %v1234, 0.0
  %1239 = vadd.xlane.f32.xlu0 %v1238
  %v1240 = vpop.xlane.xlu0 %1239
  %v1241 = vmul.f32 %v1237, %v320
  %v1242 = vmul.f32 %v1240, %v320
  %v1243 = vsub.f32 %v1233, %v1241
  %v1244 = vsub.f32 %v1234, %v1242
  %v1245 = vmul.f32 %v1243, %v1243
  %v1246 = vmul.f32 %v1244, %v1244
  %v1247 = vsel %vm36, %v1245, 0.0
  %1248 = vadd.xlane.f32.xlu0 %v1247
  %v1249 = vpop.xlane.xlu0 %1248
  %v1250 = vsel %vm36, %v1246, 0.0
  %1251 = vadd.xlane.f32.xlu0 %v1250
  %v1252 = vpop.xlane.xlu0 %1251
  %v1253 = vmul.f32 %v1249, %v320
  %v1254 = vmul.f32 %v1252, %v320
  %v1255 = vadd.f32 %v1253, 1e-08
  %v1256 = vadd.f32 %v1254, 1e-08
  %v1257 = vrsqrt.pop %v1255
  %v1258 = vrsqrt.pop %v1256
  %v1259 = vmul.f32 %v1243, %v1257
  %v1260 = vmul.f32 %v1244, %v1258
  %v1261 = vmul.f32 %v1259, %v659
  %v1262 = vmul.f32 %v1260, %v659
  %v1263 = vadd.f32 %v1261, %v667
  %v1264 = vadd.f32 %v1262, %v667
  %v1265 = vmax.f32 %v1263, 0.0
  %v1266 = vmax.f32 %v1264, 0.0
  %v1267 = vadd.f32 %v1265, %v678
  %v1268 = vadd.f32 %v1266, %v679
  %s1269 = scalar_lea.vmem %s10, 16
  %1270 = vst.msk [vmem:[%s1269] sm:$0xff] %vm36, %v1267
  %1271 = vst.msk [vmem:[%s1269 + $0x8] sm:$0xff] %vm36, %v1268
  // Predicated region
  $region38: #{tpu_custom_call.1} parent=0 // pred_check
    _
  $region39: #{tpu_custom_call.1} parent=0 // pred_check_branch
    %1273 = sbr.rel (0) target = $region41
  $region40: #{tpu_custom_call.1} parent=0 // pred_region
    _
  $region41: #{tpu_custom_call.1} parent=0 // pred_fallthru
    _
  // Predicated region
  $region42: #{tpu_custom_call.1} parent=0 // pred_check
    _
  $region43: #{tpu_custom_call.1} parent=0 // pred_check_branch
    %1275 = sbr.rel (0) target = $region45
  $region44: #{tpu_custom_call.1} parent=0 // pred_region
    _
  $region45: #{tpu_custom_call.1} parent=0 // pred_fallthru
    _
  // Predicated region
  $region46: #{tpu_custom_call.1} parent=0 // pred_check
    _
  $region47: #{tpu_custom_call.1} parent=0 // pred_check_branch
    %1277 = sbr.rel (0) target = $region49
  $region48: #{tpu_custom_call.1} parent=0 // pred_region
    _
  $region49: #{tpu_custom_call.1} parent=0 // pred_fallthru
    _
  // Predicated region
  $region50: #{tpu_custom_call.1} parent=0 // pred_check
    _
  $region51: #{tpu_custom_call.1} parent=0 // pred_check_branch
    %1279 = sbr.rel (0) target = $region53
  $region52: #{tpu_custom_call.1} parent=0 // pred_region
    _
  $region53: #{tpu_custom_call.1} parent=0 // pred_fallthru
    _

</llo_original>
